<compile_context>
chip_gen: v6e
topology: v6e:2x2x1
jax: 0.10.0
libtpu: 0.0.40
codegen_flags: <defaults>
</compile_context>

<pallas_src>
import functools

import jax
import jax.numpy as jnp
from jax import lax
from jax.experimental import pallas as pl
from jax.experimental.pallas import tpu as pltpu


def _group_norm_kernel(x_ref, w_ref, b_ref, o_ref, *, eps, cg, gpb, n_valid):
    # x_ref / o_ref block: (1, GPB, Cg, R, 128)
    # w_ref / b_ref:       (C,) float32, SMEM-resident (cheap scalar reads)
    g_blk = pl.program_id(1)
    inv_n = 1.0 / n_valid
    inv_nm1 = 1.0 / (n_valid - 1) if n_valid > 1 else 1.0

    for gi in range(gpb):                              # static, unrolled
        x = x_ref[0, gi].astype(jnp.float32)           # (Cg, R, 128)

        # One-pass statistics: padded elements are zero so they contribute
        # nothing to either sum; n_valid is the true element count.
        s = jnp.sum(x)
        s2 = jnp.sum(x * x)
        mean = s * inv_n
        # torch.Tensor.var() default is unbiased (ddof = 1), matching the
        # hand-rolled module (NOT nn.GroupNorm's biased estimator).
        var = jnp.maximum(s2 - s * mean, 0.0) * inv_nm1
        inv_std = lax.rsqrt(var + eps)

        for c in range(cg):                            # static, unrolled
            ch = (g_blk * gpb + gi) * cg + c           # global channel index
            a = inv_std * w_ref[ch]                    # folded scale
            off = b_ref[ch] - mean * a                 # folded shift
            o_ref[0, gi, c] = (x[c] * a + off).astype(o_ref.dtype)


def group_norm_3d(x, weight, bias, num_groups=16, eps=1e-5):
    """x: (N, C, H, W, D); weight/bias: anything with C elements.
    Matches GroupNorm3D.forward (unbiased variance, per-channel affine)."""
    N, C, H, W, D = x.shape
    G = num_groups
    if C % G != 0:                                     # same fallback as PyTorch module
        while C % G != 0 and G > 0:
            G -= 1
    Cg = C // G
    HWD = H * W * D

    # Lane-dense layout: pad the flattened spatial axis to a multiple of 128.
    LANES = 128
    R = pl.cdiv(HWD, LANES)
    HWD_pad = R * LANES

    x_r = x.reshape(N, G, Cg, HWD)
    if HWD_pad != HWD:
        # Zero padding keeps sum / sum-of-squares exact; the kernel divides by
        # the true element count and padded outputs are sliced away below.
        x_r = jnp.pad(x_r, ((0, 0), (0, 0), (0, 0), (0, HWD_pad - HWD)))
    x_r = x_r.reshape(N, G, Cg, R, LANES)

    w_flat = jnp.asarray(weight, jnp.float32).reshape(C)
    b_flat = jnp.asarray(bias, jnp.float32).reshape(C)

    # Fuse several groups per grid step (amortize per-step pipeline overhead
    # for small groups) while capping the block so it double-buffers
    # comfortably in VMEM on every generation (v7x: 64 MiB physical VMEM).
    itemsize = jnp.dtype(x.dtype).itemsize
    group_bytes = Cg * R * LANES * itemsize
    block_cap = 4 * 1024 * 1024
    gpb = 1
    for cand in range(G, 0, -1):
        if G % cand == 0 and cand * group_bytes <= block_cap:
            gpb = cand
            break
    # TODO(synk): for very large single groups (Cg*HWD*itemsize >> 4 MiB, e.g.
    # big 3D volumes on v7x) split HWD across a grid axis with scratch-based
    # stats accumulation instead of one whole group per block.
    block_bytes = gpb * group_bytes
    vmem_limit = int(min(100 * 1024 * 1024,
                         max(32 * 1024 * 1024, 5 * block_bytes)))

    n_valid = Cg * HWD
    kernel = functools.partial(_group_norm_kernel, eps=eps, cg=Cg, gpb=gpb,
                               n_valid=n_valid)

    total = N * C * HWD
    cost = pl.CostEstimate(
        flops=6 * total,                   # sum, sum(x*x), fused scale/shift
        transcendentals=N * G,             # one rsqrt per group
        bytes_accessed=2 * total * itemsize + 2 * C * 4,
    )

    block = (1, gpb, Cg, R, LANES)
    out = pl.pallas_call(
        kernel,
        out_shape=jax.ShapeDtypeStruct((N, G, Cg, R, LANES), x.dtype),
        grid_spec=pltpu.PrefetchScalarGridSpec(
            num_scalar_prefetch=0,
            grid=(N, G // gpb),
            in_specs=[
                pl.BlockSpec(block, lambda n, g: (n, g, 0, 0, 0)),
                pl.BlockSpec(memory_space=pltpu.MemorySpace.SMEM),
                pl.BlockSpec(memory_space=pltpu.MemorySpace.SMEM),
            ],
            out_specs=pl.BlockSpec(block, lambda n, g: (n, g, 0, 0, 0)),
        ),
        compiler_params=pltpu.CompilerParams(
            dimension_semantics=("parallel", "parallel"),
            vmem_limit_bytes=vmem_limit,
        ),
        cost_estimate=cost,
    )(x_r, w_flat, b_flat)

    out = out.reshape(N, G, Cg, HWD_pad)
    if HWD_pad != HWD:
        out = out[..., :HWD]
    return out.reshape(N, C, H, W, D)


def _reference(x, weight, bias, num_groups=16, eps=1e-5):
    """Pure-JAX reference mirroring the PyTorch forward exactly."""
    N, C, H, W, D = x.shape
    G = num_groups
    if C % G != 0:
        while C % G != 0 and G > 0:
            G -= 1
    xr = x.reshape(N, G, -1)
    mean = xr.mean(-1, keepdims=True)
    var = xr.var(-1, keepdims=True, ddof=1)    # unbiased, like torch default
    xr = (xr - mean) / jnp.sqrt(var + eps)
    return xr.reshape(N, C, H, W, D) * weight + bias


if __name__ == "__main__":
    key = jax.random.PRNGKey(0)
    kx, kw, kb = jax.random.split(key, 3)
    N, C, H, W, D = 2, 32, 8, 8, 8
    num_groups = 16
    eps = 1e-5

    x = jax.random.normal(kx, (N, C, H, W, D), dtype=jnp.float32)
    # Random affine params (instead of the ones/zeros init) so the
    # per-channel scale/shift path is actually exercised.
    weight = jax.random.normal(kw, (1, C, 1, 1, 1), dtype=jnp.float32)
    bias = jax.random.normal(kb, (1, C, 1, 1, 1), dtype=jnp.float32)

    out = group_norm_3d(x, weight, bias, num_groups=num_groups, eps=eps)
    out = jax.block_until_ready(out)

    ref = _reference(x, weight, bias, num_groups=num_groups, eps=eps)
    assert out.shape == (N, C, H, W, D)
    assert jnp.allclose(out, ref, atol=1e-4, rtol=1e-4), "mismatch vs reference"

    print("KERNEL_OK")
</pallas_src>

<mosaic_0001>
module attributes {stable_mosaic.version = 11 : i64} {
  func.func @_group_norm_kernel(%arg0: i32, %arg1: i32, %arg2: memref<1x16x2x4x128xf32, #tpu.memory_space<vmem>>, %arg3: memref<32xf32, #tpu.memory_space<smem>>, %arg4: memref<32xf32, #tpu.memory_space<smem>>, %arg5: memref<1x16x2x4x128xf32, #tpu.memory_space<vmem>>) attributes {dimension_semantics = [#tpu.dimension_semantics<parallel>, #tpu.dimension_semantics<parallel>], iteration_bounds = array<i64: 2, 1>, scalar_prefetch = 0 : i64, scratch_operands = 0 : i64, tpu.core_type = #tpu.core_type<tc>, window_params = [{transform_indices = @transform_0, window_bounds = array<i64: 1, 16, 2, 4, 128>}, {transform_indices = @transform_1, window_bounds = array<i64: 32>}, {transform_indices = @transform_2, window_bounds = array<i64: 32>}, {transform_indices = @transform_3, window_bounds = array<i64: 1, 16, 2, 4, 128>}]} {
    %c0 = arith.constant 0 : index
    %c0_0 = arith.constant 0 : index
    %c0_1 = arith.constant 0 : index
    %c0_2 = arith.constant 0 : index
    %c0_3 = arith.constant 0 : index
    %0 = vector.load %arg2[%c0, %c0_0, %c0_1, %c0_2, %c0_3] : memref<1x16x2x4x128xf32, #tpu.memory_space<vmem>>, vector<1x1x2x4x128xf32>
    %1 = vector.shape_cast %0 : vector<1x1x2x4x128xf32> to vector<2x4x128xf32>
    %2 = vector.shape_cast %1 : vector<2x4x128xf32> to vector<1x2x4x128xf32>
    %cst = arith.constant dense<0.000000e+00> : vector<1xf32>
    %3 = vector.multi_reduction <add>, %2, %cst [1, 2, 3] : vector<1x2x4x128xf32> to vector<1xf32>
    %4 = vector.shape_cast %3 : vector<1xf32> to vector<1x1x1x1xf32>
    %5 = vector.extract %4[0, 0, 0, 0] : f32 from vector<1x1x1x1xf32>
    %6 = arith.mulf %1, %1 : vector<2x4x128xf32>
    %7 = vector.shape_cast %6 : vector<2x4x128xf32> to vector<1x2x4x128xf32>
    %cst_4 = arith.constant dense<0.000000e+00> : vector<1xf32>
    %8 = vector.multi_reduction <add>, %7, %cst_4 [1, 2, 3] : vector<1x2x4x128xf32> to vector<1xf32>
    %9 = vector.shape_cast %8 : vector<1xf32> to vector<1x1x1x1xf32>
    %10 = vector.extract %9[0, 0, 0, 0] : f32 from vector<1x1x1x1xf32>
    %cst_5 = arith.constant 9.765625E-4 : f32
    %11 = arith.mulf %5, %cst_5 : f32
    %12 = arith.mulf %5, %11 : f32
    %13 = arith.subf %10, %12 : f32
    %cst_6 = arith.constant 0.000000e+00 : f32
    %14 = arith.maximumf %13, %cst_6 : f32
    %cst_7 = arith.constant 9.77517105E-4 : f32
    %15 = arith.mulf %14, %cst_7 : f32
    %cst_8 = arith.constant 9.99999974E-6 : f32
    %16 = arith.addf %15, %cst_8 : f32
    %17 = math.rsqrt %16 : f32
    %c16_i32 = arith.constant 16 : i32
    %18 = arith.muli %arg1, %c16_i32 : i32
    %c0_i32 = arith.constant 0 : i32
    %19 = arith.addi %18, %c0_i32 : i32
    %c2_i32 = arith.constant 2 : i32
    %20 = arith.muli %19, %c2_i32 : i32
    %c0_i32_9 = arith.constant 0 : i32
    %21 = arith.addi %20, %c0_i32_9 : i32
    %22 = arith.index_cast %21 : i32 to index
    %23 = memref.load %arg3[%22] : memref<32xf32, #tpu.memory_space<smem>>
    %24 = arith.mulf %17, %23 : f32
    %25 = arith.index_cast %21 : i32 to index
    %26 = memref.load %arg4[%25] : memref<32xf32, #tpu.memory_space<smem>>
    %27 = arith.mulf %11, %24 : f32
    %28 = arith.subf %26, %27 : f32
    %29 = vector.extract_strided_slice %1 {offsets = [0, 0, 0], sizes = [1, 4, 128], strides = [1, 1, 1]} : vector<2x4x128xf32> to vector<1x4x128xf32>
    %30 = vector.shape_cast %29 : vector<1x4x128xf32> to vector<4x128xf32>
    %31 = vector.broadcast %24 : f32 to vector<4x128xf32>
    %32 = arith.mulf %30, %31 : vector<4x128xf32>
    %33 = vector.broadcast %28 : f32 to vector<4x128xf32>
    %34 = arith.addf %32, %33 : vector<4x128xf32>
    %c0_10 = arith.constant 0 : index
    %c0_11 = arith.constant 0 : index
    %c0_12 = arith.constant 0 : index
    %c0_13 = arith.constant 0 : index
    %c0_14 = arith.constant 0 : index
    %35 = vector.load %arg5[%c0_10, %c0_11, %c0_12, %c0_13, %c0_14] : memref<1x16x2x4x128xf32, #tpu.memory_space<vmem>>, vector<1x1x1x4x128xf32>
    %36 = vector.shape_cast %35 : vector<1x1x1x4x128xf32> to vector<4x128xf32>
    %37 = vector.shape_cast %34 : vector<4x128xf32> to vector<1x1x1x4x128xf32>
    tpu.vector_store %arg5[%c0_10, %c0_11, %c0_12, %c0_13, %c0_14], %37 {strides = array<i32>} : memref<1x16x2x4x128xf32, #tpu.memory_space<vmem>>, vector<1x1x1x4x128xf32>,
    %c16_i32_15 = arith.constant 16 : i32
    %38 = arith.muli %arg1, %c16_i32_15 : i32
    %c0_i32_16 = arith.constant 0 : i32
    %39 = arith.addi %38, %c0_i32_16 : i32
    %c2_i32_17 = arith.constant 2 : i32
    %40 = arith.muli %39, %c2_i32_17 : i32
    %c1_i32 = arith.constant 1 : i32
    %41 = arith.addi %40, %c1_i32 : i32
    %42 = arith.index_cast %41 : i32 to index
    %43 = memref.load %arg3[%42] : memref<32xf32, #tpu.memory_space<smem>>
    %44 = arith.mulf %17, %43 : f32
    %45 = arith.index_cast %41 : i32 to index
    %46 = memref.load %arg4[%45] : memref<32xf32, #tpu.memory_space<smem>>
    %47 = arith.mulf %11, %44 : f32
    %48 = arith.subf %46, %47 : f32
    %49 = vector.extract_strided_slice %1 {offsets = [1, 0, 0], sizes = [1, 4, 128], strides = [1, 1, 1]} : vector<2x4x128xf32> to vector<1x4x128xf32>
    %50 = vector.shape_cast %49 : vector<1x4x128xf32> to vector<4x128xf32>
    %51 = vector.broadcast %44 : f32 to vector<4x128xf32>
    %52 = arith.mulf %50, %51 : vector<4x128xf32>
    %53 = vector.broadcast %48 : f32 to vector<4x128xf32>
    %54 = arith.addf %52, %53 : vector<4x128xf32>
    %c0_18 = arith.constant 0 : index
    %c0_19 = arith.constant 0 : index
    %c1 = arith.constant 1 : index
    %c0_20 = arith.constant 0 : index
    %c0_21 = arith.constant 0 : index
    %55 = vector.load %arg5[%c0_18, %c0_19, %c1, %c0_20, %c0_21] : memref<1x16x2x4x128xf32, #tpu.memory_space<vmem>>, vector<1x1x1x4x128xf32>
    %56 = vector.shape_cast %55 : vector<1x1x1x4x128xf32> to vector<4x128xf32>
    %57 = vector.shape_cast %54 : vector<4x128xf32> to vector<1x1x1x4x128xf32>
    tpu.vector_store %arg5[%c0_18, %c0_19, %c1, %c0_20, %c0_21], %57 {strides = array<i32>} : memref<1x16x2x4x128xf32, #tpu.memory_space<vmem>>, vector<1x1x1x4x128xf32>,
    %c0_22 = arith.constant 0 : index
    %c1_23 = arith.constant 1 : index
    %c0_24 = arith.constant 0 : index
    %c0_25 = arith.constant 0 : index
    %c0_26 = arith.constant 0 : index
    %58 = vector.load %arg2[%c0_22, %c1_23, %c0_24, %c0_25, %c0_26] : memref<1x16x2x4x128xf32, #tpu.memory_space<vmem>>, vector<1x1x2x4x128xf32>
    %59 = vector.shape_cast %58 : vector<1x1x2x4x128xf32> to vector<2x4x128xf32>
    %60 = vector.shape_cast %59 : vector<2x4x128xf32> to vector<1x2x4x128xf32>
    %cst_27 = arith.constant dense<0.000000e+00> : vector<1xf32>
    %61 = vector.multi_reduction <add>, %60, %cst_27 [1, 2, 3] : vector<1x2x4x128xf32> to vector<1xf32>
    %62 = vector.shape_cast %61 : vector<1xf32> to vector<1x1x1x1xf32>
    %63 = vector.extract %62[0, 0, 0, 0] : f32 from vector<1x1x1x1xf32>
    %64 = arith.mulf %59, %59 : vector<2x4x128xf32>
    %65 = vector.shape_cast %64 : vector<2x4x128xf32> to vector<1x2x4x128xf32>
    %cst_28 = arith.constant dense<0.000000e+00> : vector<1xf32>
    %66 = vector.multi_reduction <add>, %65, %cst_28 [1, 2, 3] : vector<1x2x4x128xf32> to vector<1xf32>
    %67 = vector.shape_cast %66 : vector<1xf32> to vector<1x1x1x1xf32>
    %68 = vector.extract %67[0, 0, 0, 0] : f32 from vector<1x1x1x1xf32>
    %cst_29 = arith.constant 9.765625E-4 : f32
    %69 = arith.mulf %63, %cst_29 : f32
    %70 = arith.mulf %63, %69 : f32
    %71 = arith.subf %68, %70 : f32
    %cst_30 = arith.constant 0.000000e+00 : f32
    %72 = arith.maximumf %71, %cst_30 : f32
    %cst_31 = arith.constant 9.77517105E-4 : f32
    %73 = arith.mulf %72, %cst_31 : f32
    %cst_32 = arith.constant 9.99999974E-6 : f32
    %74 = arith.addf %73, %cst_32 : f32
    %75 = math.rsqrt %74 : f32
    %c16_i32_33 = arith.constant 16 : i32
    %76 = arith.muli %arg1, %c16_i32_33 : i32
    %c1_i32_34 = arith.constant 1 : i32
    %77 = arith.addi %76, %c1_i32_34 : i32
    %c2_i32_35 = arith.constant 2 : i32
    %78 = arith.muli %77, %c2_i32_35 : i32
    %c0_i32_36 = arith.constant 0 : i32
    %79 = arith.addi %78, %c0_i32_36 : i32
    %80 = arith.index_cast %79 : i32 to index
    %81 = memref.load %arg3[%80] : memref<32xf32, #tpu.memory_space<smem>>
    %82 = arith.mulf %75, %81 : f32
    %83 = arith.index_cast %79 : i32 to index
    %84 = memref.load %arg4[%83] : memref<32xf32, #tpu.memory_space<smem>>
    %85 = arith.mulf %69, %82 : f32
    %86 = arith.subf %84, %85 : f32
    %87 = vector.extract_strided_slice %59 {offsets = [0, 0, 0], sizes = [1, 4, 128], strides = [1, 1, 1]} : vector<2x4x128xf32> to vector<1x4x128xf32>
    %88 = vector.shape_cast %87 : vector<1x4x128xf32> to vector<4x128xf32>
    %89 = vector.broadcast %82 : f32 to vector<4x128xf32>
    %90 = arith.mulf %88, %89 : vector<4x128xf32>
    %91 = vector.broadcast %86 : f32 to vector<4x128xf32>
    %92 = arith.addf %90, %91 : vector<4x128xf32>
    %c0_37 = arith.constant 0 : index
    %c1_38 = arith.constant 1 : index
    %c0_39 = arith.constant 0 : index
    %c0_40 = arith.constant 0 : index
    %c0_41 = arith.constant 0 : index
    %93 = vector.load %arg5[%c0_37, %c1_38, %c0_39, %c0_40, %c0_41] : memref<1x16x2x4x128xf32, #tpu.memory_space<vmem>>, vector<1x1x1x4x128xf32>
    %94 = vector.shape_cast %93 : vector<1x1x1x4x128xf32> to vector<4x128xf32>
    %95 = vector.shape_cast %92 : vector<4x128xf32> to vector<1x1x1x4x128xf32>
    tpu.vector_store %arg5[%c0_37, %c1_38, %c0_39, %c0_40, %c0_41], %95 {strides = array<i32>} : memref<1x16x2x4x128xf32, #tpu.memory_space<vmem>>, vector<1x1x1x4x128xf32>,
    %c16_i32_42 = arith.constant 16 : i32
    %96 = arith.muli %arg1, %c16_i32_42 : i32
    %c1_i32_43 = arith.constant 1 : i32
    %97 = arith.addi %96, %c1_i32_43 : i32
    %c2_i32_44 = arith.constant 2 : i32
    %98 = arith.muli %97, %c2_i32_44 : i32
    %c1_i32_45 = arith.constant 1 : i32
    %99 = arith.addi %98, %c1_i32_45 : i32
    %100 = arith.index_cast %99 : i32 to index
    %101 = memref.load %arg3[%100] : memref<32xf32, #tpu.memory_space<smem>>
    %102 = arith.mulf %75, %101 : f32
    %103 = arith.index_cast %99 : i32 to index
    %104 = memref.load %arg4[%103] : memref<32xf32, #tpu.memory_space<smem>>
    %105 = arith.mulf %69, %102 : f32
    %106 = arith.subf %104, %105 : f32
    %107 = vector.extract_strided_slice %59 {offsets = [1, 0, 0], sizes = [1, 4, 128], strides = [1, 1, 1]} : vector<2x4x128xf32> to vector<1x4x128xf32>
    %108 = vector.shape_cast %107 : vector<1x4x128xf32> to vector<4x128xf32>
    %109 = vector.broadcast %102 : f32 to vector<4x128xf32>
    %110 = arith.mulf %108, %109 : vector<4x128xf32>
    %111 = vector.broadcast %106 : f32 to vector<4x128xf32>
    %112 = arith.addf %110, %111 : vector<4x128xf32>
    %c0_46 = arith.constant 0 : index
    %c1_47 = arith.constant 1 : index
    %c1_48 = arith.constant 1 : index
    %c0_49 = arith.constant 0 : index
    %c0_50 = arith.constant 0 : index
    %113 = vector.load %arg5[%c0_46, %c1_47, %c1_48, %c0_49, %c0_50] : memref<1x16x2x4x128xf32, #tpu.memory_space<vmem>>, vector<1x1x1x4x128xf32>
    %114 = vector.shape_cast %113 : vector<1x1x1x4x128xf32> to vector<4x128xf32>
    %115 = vector.shape_cast %112 : vector<4x128xf32> to vector<1x1x1x4x128xf32>
    tpu.vector_store %arg5[%c0_46, %c1_47, %c1_48, %c0_49, %c0_50], %115 {strides = array<i32>} : memref<1x16x2x4x128xf32, #tpu.memory_space<vmem>>, vector<1x1x1x4x128xf32>,
    %c0_51 = arith.constant 0 : index
    %c2 = arith.constant 2 : index
    %c0_52 = arith.constant 0 : index
    %c0_53 = arith.constant 0 : index
    %c0_54 = arith.constant 0 : index
    %116 = vector.load %arg2[%c0_51, %c2, %c0_52, %c0_53, %c0_54] : memref<1x16x2x4x128xf32, #tpu.memory_space<vmem>>, vector<1x1x2x4x128xf32>
    %117 = vector.shape_cast %116 : vector<1x1x2x4x128xf32> to vector<2x4x128xf32>
    %118 = vector.shape_cast %117 : vector<2x4x128xf32> to vector<1x2x4x128xf32>
    %cst_55 = arith.constant dense<0.000000e+00> : vector<1xf32>
    %119 = vector.multi_reduction <add>, %118, %cst_55 [1, 2, 3] : vector<1x2x4x128xf32> to vector<1xf32>
    %120 = vector.shape_cast %119 : vector<1xf32> to vector<1x1x1x1xf32>
    %121 = vector.extract %120[0, 0, 0, 0] : f32 from vector<1x1x1x1xf32>
    %122 = arith.mulf %117, %117 : vector<2x4x128xf32>
    %123 = vector.shape_cast %122 : vector<2x4x128xf32> to vector<1x2x4x128xf32>
    %cst_56 = arith.constant dense<0.000000e+00> : vector<1xf32>
    %124 = vector.multi_reduction <add>, %123, %cst_56 [1, 2, 3] : vector<1x2x4x128xf32> to vector<1xf32>
    %125 = vector.shape_cast %124 : vector<1xf32> to vector<1x1x1x1xf32>
    %126 = vector.extract %125[0, 0, 0, 0] : f32 from vector<1x1x1x1xf32>
    %cst_57 = arith.constant 9.765625E-4 : f32
    %127 = arith.mulf %121, %cst_57 : f32
    %128 = arith.mulf %121, %127 : f32
    %129 = arith.subf %126, %128 : f32
    %cst_58 = arith.constant 0.000000e+00 : f32
    %130 = arith.maximumf %129, %cst_58 : f32
    %cst_59 = arith.constant 9.77517105E-4 : f32
    %131 = arith.mulf %130, %cst_59 : f32
    %cst_60 = arith.constant 9.99999974E-6 : f32
    %132 = arith.addf %131, %cst_60 : f32
    %133 = math.rsqrt %132 : f32
    %c16_i32_61 = arith.constant 16 : i32
    %134 = arith.muli %arg1, %c16_i32_61 : i32
    %c2_i32_62 = arith.constant 2 : i32
    %135 = arith.addi %134, %c2_i32_62 : i32
    %c2_i32_63 = arith.constant 2 : i32
    %136 = arith.muli %135, %c2_i32_63 : i32
    %c0_i32_64 = arith.constant 0 : i32
    %137 = arith.addi %136, %c0_i32_64 : i32
    %138 = arith.index_cast %137 : i32 to index
    %139 = memref.load %arg3[%138] : memref<32xf32, #tpu.memory_space<smem>>
    %140 = arith.mulf %133, %139 : f32
    %141 = arith.index_cast %137 : i32 to index
    %142 = memref.load %arg4[%141] : memref<32xf32, #tpu.memory_space<smem>>
    %143 = arith.mulf %127, %140 : f32
    %144 = arith.subf %142, %143 : f32
    %145 = vector.extract_strided_slice %117 {offsets = [0, 0, 0], sizes = [1, 4, 128], strides = [1, 1, 1]} : vector<2x4x128xf32> to vector<1x4x128xf32>
    %146 = vector.shape_cast %145 : vector<1x4x128xf32> to vector<4x128xf32>
    %147 = vector.broadcast %140 : f32 to vector<4x128xf32>
    %148 = arith.mulf %146, %147 : vector<4x128xf32>
    %149 = vector.broadcast %144 : f32 to vector<4x128xf32>
    %150 = arith.addf %148, %149 : vector<4x128xf32>
    %c0_65 = arith.constant 0 : index
    %c2_66 = arith.constant 2 : index
    %c0_67 = arith.constant 0 : index
    %c0_68 = arith.constant 0 : index
    %c0_69 = arith.constant 0 : index
    %151 = vector.load %arg5[%c0_65, %c2_66, %c0_67, %c0_68, %c0_69] : memref<1x16x2x4x128xf32, #tpu.memory_space<vmem>>, vector<1x1x1x4x128xf32>
    %152 = vector.shape_cast %151 : vector<1x1x1x4x128xf32> to vector<4x128xf32>
    %153 = vector.shape_cast %150 : vector<4x128xf32> to vector<1x1x1x4x128xf32>
    tpu.vector_store %arg5[%c0_65, %c2_66, %c0_67, %c0_68, %c0_69], %153 {strides = array<i32>} : memref<1x16x2x4x128xf32, #tpu.memory_space<vmem>>, vector<1x1x1x4x128xf32>,
    %c16_i32_70 = arith.constant 16 : i32
    %154 = arith.muli %arg1, %c16_i32_70 : i32
    %c2_i32_71 = arith.constant 2 : i32
    %155 = arith.addi %154, %c2_i32_71 : i32
    %c2_i32_72 = arith.constant 2 : i32
    %156 = arith.muli %155, %c2_i32_72 : i32
    %c1_i32_73 = arith.constant 1 : i32
    %157 = arith.addi %156, %c1_i32_73 : i32
    %158 = arith.index_cast %157 : i32 to index
    %159 = memref.load %arg3[%158] : memref<32xf32, #tpu.memory_space<smem>>
    %160 = arith.mulf %133, %159 : f32
    %161 = arith.index_cast %157 : i32 to index
    %162 = memref.load %arg4[%161] : memref<32xf32, #tpu.memory_space<smem>>
    %163 = arith.mulf %127, %160 : f32
    %164 = arith.subf %162, %163 : f32
    %165 = vector.extract_strided_slice %117 {offsets = [1, 0, 0], sizes = [1, 4, 128], strides = [1, 1, 1]} : vector<2x4x128xf32> to vector<1x4x128xf32>
    %166 = vector.shape_cast %165 : vector<1x4x128xf32> to vector<4x128xf32>
    %167 = vector.broadcast %160 : f32 to vector<4x128xf32>
    %168 = arith.mulf %166, %167 : vector<4x128xf32>
    %169 = vector.broadcast %164 : f32 to vector<4x128xf32>
    %170 = arith.addf %168, %169 : vector<4x128xf32>
    %c0_74 = arith.constant 0 : index
    %c2_75 = arith.constant 2 : index
    %c1_76 = arith.constant 1 : index
    %c0_77 = arith.constant 0 : index
    %c0_78 = arith.constant 0 : index
    %171 = vector.load %arg5[%c0_74, %c2_75, %c1_76, %c0_77, %c0_78] : memref<1x16x2x4x128xf32, #tpu.memory_space<vmem>>, vector<1x1x1x4x128xf32>
    %172 = vector.shape_cast %171 : vector<1x1x1x4x128xf32> to vector<4x128xf32>
    %173 = vector.shape_cast %170 : vector<4x128xf32> to vector<1x1x1x4x128xf32>
    tpu.vector_store %arg5[%c0_74, %c2_75, %c1_76, %c0_77, %c0_78], %173 {strides = array<i32>} : memref<1x16x2x4x128xf32, #tpu.memory_space<vmem>>, vector<1x1x1x4x128xf32>,
    %c0_79 = arith.constant 0 : index
    %c3 = arith.constant 3 : index
    %c0_80 = arith.constant 0 : index
    %c0_81 = arith.constant 0 : index
    %c0_82 = arith.constant 0 : index
    %174 = vector.load %arg2[%c0_79, %c3, %c0_80, %c0_81, %c0_82] : memref<1x16x2x4x128xf32, #tpu.memory_space<vmem>>, vector<1x1x2x4x128xf32>
    %175 = vector.shape_cast %174 : vector<1x1x2x4x128xf32> to vector<2x4x128xf32>
    %176 = vector.shape_cast %175 : vector<2x4x128xf32> to vector<1x2x4x128xf32>
    %cst_83 = arith.constant dense<0.000000e+00> : vector<1xf32>
    %177 = vector.multi_reduction <add>, %176, %cst_83 [1, 2, 3] : vector<1x2x4x128xf32> to vector<1xf32>
    %178 = vector.shape_cast %177 : vector<1xf32> to vector<1x1x1x1xf32>
    %179 = vector.extract %178[0, 0, 0, 0] : f32 from vector<1x1x1x1xf32>
    %180 = arith.mulf %175, %175 : vector<2x4x128xf32>
    %181 = vector.shape_cast %180 : vector<2x4x128xf32> to vector<1x2x4x128xf32>
    %cst_84 = arith.constant dense<0.000000e+00> : vector<1xf32>
    %182 = vector.multi_reduction <add>, %181, %cst_84 [1, 2, 3] : vector<1x2x4x128xf32> to vector<1xf32>
    %183 = vector.shape_cast %182 : vector<1xf32> to vector<1x1x1x1xf32>
    %184 = vector.extract %183[0, 0, 0, 0] : f32 from vector<1x1x1x1xf32>
    %cst_85 = arith.constant 9.765625E-4 : f32
    %185 = arith.mulf %179, %cst_85 : f32
    %186 = arith.mulf %179, %185 : f32
    %187 = arith.subf %184, %186 : f32
    %cst_86 = arith.constant 0.000000e+00 : f32
    %188 = arith.maximumf %187, %cst_86 : f32
    %cst_87 = arith.constant 9.77517105E-4 : f32
    %189 = arith.mulf %188, %cst_87 : f32
    %cst_88 = arith.constant 9.99999974E-6 : f32
    %190 = arith.addf %189, %cst_88 : f32
    %191 = math.rsqrt %190 : f32
    %c16_i32_89 = arith.constant 16 : i32
    %192 = arith.muli %arg1, %c16_i32_89 : i32
    %c3_i32 = arith.constant 3 : i32
    %193 = arith.addi %192, %c3_i32 : i32
    %c2_i32_90 = arith.constant 2 : i32
    %194 = arith.muli %193, %c2_i32_90 : i32
    %c0_i32_91 = arith.constant 0 : i32
    %195 = arith.addi %194, %c0_i32_91 : i32
    %196 = arith.index_cast %195 : i32 to index
    %197 = memref.load %arg3[%196] : memref<32xf32, #tpu.memory_space<smem>>
    %198 = arith.mulf %191, %197 : f32
    %199 = arith.index_cast %195 : i32 to index
    %200 = memref.load %arg4[%199] : memref<32xf32, #tpu.memory_space<smem>>
    %201 = arith.mulf %185, %198 : f32
    %202 = arith.subf %200, %201 : f32
    %203 = vector.extract_strided_slice %175 {offsets = [0, 0, 0], sizes = [1, 4, 128], strides = [1, 1, 1]} : vector<2x4x128xf32> to vector<1x4x128xf32>
    %204 = vector.shape_cast %203 : vector<1x4x128xf32> to vector<4x128xf32>
    %205 = vector.broadcast %198 : f32 to vector<4x128xf32>
    %206 = arith.mulf %204, %205 : vector<4x128xf32>
    %207 = vector.broadcast %202 : f32 to vector<4x128xf32>
    %208 = arith.addf %206, %207 : vector<4x128xf32>
    %c0_92 = arith.constant 0 : index
    %c3_93 = arith.constant 3 : index
    %c0_94 = arith.constant 0 : index
    %c0_95 = arith.constant 0 : index
    %c0_96 = arith.constant 0 : index
    %209 = vector.load %arg5[%c0_92, %c3_93, %c0_94, %c0_95, %c0_96] : memref<1x16x2x4x128xf32, #tpu.memory_space<vmem>>, vector<1x1x1x4x128xf32>
    %210 = vector.shape_cast %209 : vector<1x1x1x4x128xf32> to vector<4x128xf32>
    %211 = vector.shape_cast %208 : vector<4x128xf32> to vector<1x1x1x4x128xf32>
    tpu.vector_store %arg5[%c0_92, %c3_93, %c0_94, %c0_95, %c0_96], %211 {strides = array<i32>} : memref<1x16x2x4x128xf32, #tpu.memory_space<vmem>>, vector<1x1x1x4x128xf32>,
    %c16_i32_97 = arith.constant 16 : i32
    %212 = arith.muli %arg1, %c16_i32_97 : i32
    %c3_i32_98 = arith.constant 3 : i32
    %213 = arith.addi %212, %c3_i32_98 : i32
    %c2_i32_99 = arith.constant 2 : i32
    %214 = arith.muli %213, %c2_i32_99 : i32
    %c1_i32_100 = arith.constant 1 : i32
    %215 = arith.addi %214, %c1_i32_100 : i32
    %216 = arith.index_cast %215 : i32 to index
    %217 = memref.load %arg3[%216] : memref<32xf32, #tpu.memory_space<smem>>
    %218 = arith.mulf %191, %217 : f32
    %219 = arith.index_cast %215 : i32 to index
    %220 = memref.load %arg4[%219] : memref<32xf32, #tpu.memory_space<smem>>
    %221 = arith.mulf %185, %218 : f32
    %222 = arith.subf %220, %221 : f32
    %223 = vector.extract_strided_slice %175 {offsets = [1, 0, 0], sizes = [1, 4, 128], strides = [1, 1, 1]} : vector<2x4x128xf32> to vector<1x4x128xf32>
    %224 = vector.shape_cast %223 : vector<1x4x128xf32> to vector<4x128xf32>
    %225 = vector.broadcast %218 : f32 to vector<4x128xf32>
    %226 = arith.mulf %224, %225 : vector<4x128xf32>
    %227 = vector.broadcast %222 : f32 to vector<4x128xf32>
    %228 = arith.addf %226, %227 : vector<4x128xf32>
    %c0_101 = arith.constant 0 : index
    %c3_102 = arith.constant 3 : index
    %c1_103 = arith.constant 1 : index
    %c0_104 = arith.constant 0 : index
    %c0_105 = arith.constant 0 : index
    %229 = vector.load %arg5[%c0_101, %c3_102, %c1_103, %c0_104, %c0_105] : memref<1x16x2x4x128xf32, #tpu.memory_space<vmem>>, vector<1x1x1x4x128xf32>
    %230 = vector.shape_cast %229 : vector<1x1x1x4x128xf32> to vector<4x128xf32>
    %231 = vector.shape_cast %228 : vector<4x128xf32> to vector<1x1x1x4x128xf32>
    tpu.vector_store %arg5[%c0_101, %c3_102, %c1_103, %c0_104, %c0_105], %231 {strides = array<i32>} : memref<1x16x2x4x128xf32, #tpu.memory_space<vmem>>, vector<1x1x1x4x128xf32>,
    %c0_106 = arith.constant 0 : index
    %c4 = arith.constant 4 : index
    %c0_107 = arith.constant 0 : index
    %c0_108 = arith.constant 0 : index
    %c0_109 = arith.constant 0 : index
    %232 = vector.load %arg2[%c0_106, %c4, %c0_107, %c0_108, %c0_109] : memref<1x16x2x4x128xf32, #tpu.memory_space<vmem>>, vector<1x1x2x4x128xf32>
    %233 = vector.shape_cast %232 : vector<1x1x2x4x128xf32> to vector<2x4x128xf32>
    %234 = vector.shape_cast %233 : vector<2x4x128xf32> to vector<1x2x4x128xf32>
    %cst_110 = arith.constant dense<0.000000e+00> : vector<1xf32>
    %235 = vector.multi_reduction <add>, %234, %cst_110 [1, 2, 3] : vector<1x2x4x128xf32> to vector<1xf32>
    %236 = vector.shape_cast %235 : vector<1xf32> to vector<1x1x1x1xf32>
    %237 = vector.extract %236[0, 0, 0, 0] : f32 from vector<1x1x1x1xf32>
    %238 = arith.mulf %233, %233 : vector<2x4x128xf32>
    %239 = vector.shape_cast %238 : vector<2x4x128xf32> to vector<1x2x4x128xf32>
    %cst_111 = arith.constant dense<0.000000e+00> : vector<1xf32>
    %240 = vector.multi_reduction <add>, %239, %cst_111 [1, 2, 3] : vector<1x2x4x128xf32> to vector<1xf32>
    %241 = vector.shape_cast %240 : vector<1xf32> to vector<1x1x1x1xf32>
    %242 = vector.extract %241[0, 0, 0, 0] : f32 from vector<1x1x1x1xf32>
    %cst_112 = arith.constant 9.765625E-4 : f32
    %243 = arith.mulf %237, %cst_112 : f32
    %244 = arith.mulf %237, %243 : f32
    %245 = arith.subf %242, %244 : f32
    %cst_113 = arith.constant 0.000000e+00 : f32
    %246 = arith.maximumf %245, %cst_113 : f32
    %cst_114 = arith.constant 9.77517105E-4 : f32
    %247 = arith.mulf %246, %cst_114 : f32
    %cst_115 = arith.constant 9.99999974E-6 : f32
    %248 = arith.addf %247, %cst_115 : f32
    %249 = math.rsqrt %248 : f32
    %c16_i32_116 = arith.constant 16 : i32
    %250 = arith.muli %arg1, %c16_i32_116 : i32
    %c4_i32 = arith.constant 4 : i32
    %251 = arith.addi %250, %c4_i32 : i32
    %c2_i32_117 = arith.constant 2 : i32
    %252 = arith.muli %251, %c2_i32_117 : i32
    %c0_i32_118 = arith.constant 0 : i32
    %253 = arith.addi %252, %c0_i32_118 : i32
    %254 = arith.index_cast %253 : i32 to index
    %255 = memref.load %arg3[%254] : memref<32xf32, #tpu.memory_space<smem>>
    %256 = arith.mulf %249, %255 : f32
    %257 = arith.index_cast %253 : i32 to index
    %258 = memref.load %arg4[%257] : memref<32xf32, #tpu.memory_space<smem>>
    %259 = arith.mulf %243, %256 : f32
    %260 = arith.subf %258, %259 : f32
    %261 = vector.extract_strided_slice %233 {offsets = [0, 0, 0], sizes = [1, 4, 128], strides = [1, 1, 1]} : vector<2x4x128xf32> to vector<1x4x128xf32>
    %262 = vector.shape_cast %261 : vector<1x4x128xf32> to vector<4x128xf32>
    %263 = vector.broadcast %256 : f32 to vector<4x128xf32>
    %264 = arith.mulf %262, %263 : vector<4x128xf32>
    %265 = vector.broadcast %260 : f32 to vector<4x128xf32>
    %266 = arith.addf %264, %265 : vector<4x128xf32>
    %c0_119 = arith.constant 0 : index
    %c4_120 = arith.constant 4 : index
    %c0_121 = arith.constant 0 : index
    %c0_122 = arith.constant 0 : index
    %c0_123 = arith.constant 0 : index
    %267 = vector.load %arg5[%c0_119, %c4_120, %c0_121, %c0_122, %c0_123] : memref<1x16x2x4x128xf32, #tpu.memory_space<vmem>>, vector<1x1x1x4x128xf32>
    %268 = vector.shape_cast %267 : vector<1x1x1x4x128xf32> to vector<4x128xf32>
    %269 = vector.shape_cast %266 : vector<4x128xf32> to vector<1x1x1x4x128xf32>
    tpu.vector_store %arg5[%c0_119, %c4_120, %c0_121, %c0_122, %c0_123], %269 {strides = array<i32>} : memref<1x16x2x4x128xf32, #tpu.memory_space<vmem>>, vector<1x1x1x4x128xf32>,
    %c16_i32_124 = arith.constant 16 : i32
    %270 = arith.muli %arg1, %c16_i32_124 : i32
    %c4_i32_125 = arith.constant 4 : i32
    %271 = arith.addi %270, %c4_i32_125 : i32
    %c2_i32_126 = arith.constant 2 : i32
    %272 = arith.muli %271, %c2_i32_126 : i32
    %c1_i32_127 = arith.constant 1 : i32
    %273 = arith.addi %272, %c1_i32_127 : i32
    %274 = arith.index_cast %273 : i32 to index
    %275 = memref.load %arg3[%274] : memref<32xf32, #tpu.memory_space<smem>>
    %276 = arith.mulf %249, %275 : f32
    %277 = arith.index_cast %273 : i32 to index
    %278 = memref.load %arg4[%277] : memref<32xf32, #tpu.memory_space<smem>>
    %279 = arith.mulf %243, %276 : f32
    %280 = arith.subf %278, %279 : f32
    %281 = vector.extract_strided_slice %233 {offsets = [1, 0, 0], sizes = [1, 4, 128], strides = [1, 1, 1]} : vector<2x4x128xf32> to vector<1x4x128xf32>
    %282 = vector.shape_cast %281 : vector<1x4x128xf32> to vector<4x128xf32>
    %283 = vector.broadcast %276 : f32 to vector<4x128xf32>
    %284 = arith.mulf %282, %283 : vector<4x128xf32>
    %285 = vector.broadcast %280 : f32 to vector<4x128xf32>
    %286 = arith.addf %284, %285 : vector<4x128xf32>
    %c0_128 = arith.constant 0 : index
    %c4_129 = arith.constant 4 : index
    %c1_130 = arith.constant 1 : index
    %c0_131 = arith.constant 0 : index
    %c0_132 = arith.constant 0 : index
    %287 = vector.load %arg5[%c0_128, %c4_129, %c1_130, %c0_131, %c0_132] : memref<1x16x2x4x128xf32, #tpu.memory_space<vmem>>, vector<1x1x1x4x128xf32>
    %288 = vector.shape_cast %287 : vector<1x1x1x4x128xf32> to vector<4x128xf32>
    %289 = vector.shape_cast %286 : vector<4x128xf32> to vector<1x1x1x4x128xf32>
    tpu.vector_store %arg5[%c0_128, %c4_129, %c1_130, %c0_131, %c0_132], %289 {strides = array<i32>} : memref<1x16x2x4x128xf32, #tpu.memory_space<vmem>>, vector<1x1x1x4x128xf32>,
    %c0_133 = arith.constant 0 : index
    %c5 = arith.constant 5 : index
    %c0_134 = arith.constant 0 : index
    %c0_135 = arith.constant 0 : index
    %c0_136 = arith.constant 0 : index
    %290 = vector.load %arg2[%c0_133, %c5, %c0_134, %c0_135, %c0_136] : memref<1x16x2x4x128xf32, #tpu.memory_space<vmem>>, vector<1x1x2x4x128xf32>
    %291 = vector.shape_cast %290 : vector<1x1x2x4x128xf32> to vector<2x4x128xf32>
    %292 = vector.shape_cast %291 : vector<2x4x128xf32> to vector<1x2x4x128xf32>
    %cst_137 = arith.constant dense<0.000000e+00> : vector<1xf32>
    %293 = vector.multi_reduction <add>, %292, %cst_137 [1, 2, 3] : vector<1x2x4x128xf32> to vector<1xf32>
    %294 = vector.shape_cast %293 : vector<1xf32> to vector<1x1x1x1xf32>
    %295 = vector.extract %294[0, 0, 0, 0] : f32 from vector<1x1x1x1xf32>
    %296 = arith.mulf %291, %291 : vector<2x4x128xf32>
    %297 = vector.shape_cast %296 : vector<2x4x128xf32> to vector<1x2x4x128xf32>
    %cst_138 = arith.constant dense<0.000000e+00> : vector<1xf32>
    %298 = vector.multi_reduction <add>, %297, %cst_138 [1, 2, 3] : vector<1x2x4x128xf32> to vector<1xf32>
    %299 = vector.shape_cast %298 : vector<1xf32> to vector<1x1x1x1xf32>
    %300 = vector.extract %299[0, 0, 0, 0] : f32 from vector<1x1x1x1xf32>
    %cst_139 = arith.constant 9.765625E-4 : f32
    %301 = arith.mulf %295, %cst_139 : f32
    %302 = arith.mulf %295, %301 : f32
    %303 = arith.subf %300, %302 : f32
    %cst_140 = arith.constant 0.000000e+00 : f32
    %304 = arith.maximumf %303, %cst_140 : f32
    %cst_141 = arith.constant 9.77517105E-4 : f32
    %305 = arith.mulf %304, %cst_141 : f32
    %cst_142 = arith.constant 9.99999974E-6 : f32
    %306 = arith.addf %305, %cst_142 : f32
    %307 = math.rsqrt %306 : f32
    %c16_i32_143 = arith.constant 16 : i32
    %308 = arith.muli %arg1, %c16_i32_143 : i32
    %c5_i32 = arith.constant 5 : i32
    %309 = arith.addi %308, %c5_i32 : i32
    %c2_i32_144 = arith.constant 2 : i32
    %310 = arith.muli %309, %c2_i32_144 : i32
    %c0_i32_145 = arith.constant 0 : i32
    %311 = arith.addi %310, %c0_i32_145 : i32
    %312 = arith.index_cast %311 : i32 to index
    %313 = memref.load %arg3[%312] : memref<32xf32, #tpu.memory_space<smem>>
    %314 = arith.mulf %307, %313 : f32
    %315 = arith.index_cast %311 : i32 to index
    %316 = memref.load %arg4[%315] : memref<32xf32, #tpu.memory_space<smem>>
    %317 = arith.mulf %301, %314 : f32
    %318 = arith.subf %316, %317 : f32
    %319 = vector.extract_strided_slice %291 {offsets = [0, 0, 0], sizes = [1, 4, 128], strides = [1, 1, 1]} : vector<2x4x128xf32> to vector<1x4x128xf32>
    %320 = vector.shape_cast %319 : vector<1x4x128xf32> to vector<4x128xf32>
    %321 = vector.broadcast %314 : f32 to vector<4x128xf32>
    %322 = arith.mulf %320, %321 : vector<4x128xf32>
    %323 = vector.broadcast %318 : f32 to vector<4x128xf32>
    %324 = arith.addf %322, %323 : vector<4x128xf32>
    %c0_146 = arith.constant 0 : index
    %c5_147 = arith.constant 5 : index
    %c0_148 = arith.constant 0 : index
    %c0_149 = arith.constant 0 : index
    %c0_150 = arith.constant 0 : index
    %325 = vector.load %arg5[%c0_146, %c5_147, %c0_148, %c0_149, %c0_150] : memref<1x16x2x4x128xf32, #tpu.memory_space<vmem>>, vector<1x1x1x4x128xf32>
    %326 = vector.shape_cast %325 : vector<1x1x1x4x128xf32> to vector<4x128xf32>
    %327 = vector.shape_cast %324 : vector<4x128xf32> to vector<1x1x1x4x128xf32>
    tpu.vector_store %arg5[%c0_146, %c5_147, %c0_148, %c0_149, %c0_150], %327 {strides = array<i32>} : memref<1x16x2x4x128xf32, #tpu.memory_space<vmem>>, vector<1x1x1x4x128xf32>,
    %c16_i32_151 = arith.constant 16 : i32
    %328 = arith.muli %arg1, %c16_i32_151 : i32
    %c5_i32_152 = arith.constant 5 : i32
    %329 = arith.addi %328, %c5_i32_152 : i32
    %c2_i32_153 = arith.constant 2 : i32
    %330 = arith.muli %329, %c2_i32_153 : i32
    %c1_i32_154 = arith.constant 1 : i32
    %331 = arith.addi %330, %c1_i32_154 : i32
    %332 = arith.index_cast %331 : i32 to index
    %333 = memref.load %arg3[%332] : memref<32xf32, #tpu.memory_space<smem>>
    %334 = arith.mulf %307, %333 : f32
    %335 = arith.index_cast %331 : i32 to index
    %336 = memref.load %arg4[%335] : memref<32xf32, #tpu.memory_space<smem>>
    %337 = arith.mulf %301, %334 : f32
    %338 = arith.subf %336, %337 : f32
    %339 = vector.extract_strided_slice %291 {offsets = [1, 0, 0], sizes = [1, 4, 128], strides = [1, 1, 1]} : vector<2x4x128xf32> to vector<1x4x128xf32>
    %340 = vector.shape_cast %339 : vector<1x4x128xf32> to vector<4x128xf32>
    %341 = vector.broadcast %334 : f32 to vector<4x128xf32>
    %342 = arith.mulf %340, %341 : vector<4x128xf32>
    %343 = vector.broadcast %338 : f32 to vector<4x128xf32>
    %344 = arith.addf %342, %343 : vector<4x128xf32>
    %c0_155 = arith.constant 0 : index
    %c5_156 = arith.constant 5 : index
    %c1_157 = arith.constant 1 : index
    %c0_158 = arith.constant 0 : index
    %c0_159 = arith.constant 0 : index
    %345 = vector.load %arg5[%c0_155, %c5_156, %c1_157, %c0_158, %c0_159] : memref<1x16x2x4x128xf32, #tpu.memory_space<vmem>>, vector<1x1x1x4x128xf32>
    %346 = vector.shape_cast %345 : vector<1x1x1x4x128xf32> to vector<4x128xf32>
    %347 = vector.shape_cast %344 : vector<4x128xf32> to vector<1x1x1x4x128xf32>
    tpu.vector_store %arg5[%c0_155, %c5_156, %c1_157, %c0_158, %c0_159], %347 {strides = array<i32>} : memref<1x16x2x4x128xf32, #tpu.memory_space<vmem>>, vector<1x1x1x4x128xf32>,
    %c0_160 = arith.constant 0 : index
    %c6 = arith.constant 6 : index
    %c0_161 = arith.constant 0 : index
    %c0_162 = arith.constant 0 : index
    %c0_163 = arith.constant 0 : index
    %348 = vector.load %arg2[%c0_160, %c6, %c0_161, %c0_162, %c0_163] : memref<1x16x2x4x128xf32, #tpu.memory_space<vmem>>, vector<1x1x2x4x128xf32>
    %349 = vector.shape_cast %348 : vector<1x1x2x4x128xf32> to vector<2x4x128xf32>
    %350 = vector.shape_cast %349 : vector<2x4x128xf32> to vector<1x2x4x128xf32>
    %cst_164 = arith.constant dense<0.000000e+00> : vector<1xf32>
    %351 = vector.multi_reduction <add>, %350, %cst_164 [1, 2, 3] : vector<1x2x4x128xf32> to vector<1xf32>
    %352 = vector.shape_cast %351 : vector<1xf32> to vector<1x1x1x1xf32>
    %353 = vector.extract %352[0, 0, 0, 0] : f32 from vector<1x1x1x1xf32>
    %354 = arith.mulf %349, %349 : vector<2x4x128xf32>
    %355 = vector.shape_cast %354 : vector<2x4x128xf32> to vector<1x2x4x128xf32>
    %cst_165 = arith.constant dense<0.000000e+00> : vector<1xf32>
    %356 = vector.multi_reduction <add>, %355, %cst_165 [1, 2, 3] : vector<1x2x4x128xf32> to vector<1xf32>
    %357 = vector.shape_cast %356 : vector<1xf32> to vector<1x1x1x1xf32>
    %358 = vector.extract %357[0, 0, 0, 0] : f32 from vector<1x1x1x1xf32>
    %cst_166 = arith.constant 9.765625E-4 : f32
    %359 = arith.mulf %353, %cst_166 : f32
    %360 = arith.mulf %353, %359 : f32
    %361 = arith.subf %358, %360 : f32
    %cst_167 = arith.constant 0.000000e+00 : f32
    %362 = arith.maximumf %361, %cst_167 : f32
    %cst_168 = arith.constant 9.77517105E-4 : f32
    %363 = arith.mulf %362, %cst_168 : f32
    %cst_169 = arith.constant 9.99999974E-6 : f32
    %364 = arith.addf %363, %cst_169 : f32
    %365 = math.rsqrt %364 : f32
    %c16_i32_170 = arith.constant 16 : i32
    %366 = arith.muli %arg1, %c16_i32_170 : i32
    %c6_i32 = arith.constant 6 : i32
    %367 = arith.addi %366, %c6_i32 : i32
    %c2_i32_171 = arith.constant 2 : i32
    %368 = arith.muli %367, %c2_i32_171 : i32
    %c0_i32_172 = arith.constant 0 : i32
    %369 = arith.addi %368, %c0_i32_172 : i32
    %370 = arith.index_cast %369 : i32 to index
    %371 = memref.load %arg3[%370] : memref<32xf32, #tpu.memory_space<smem>>
    %372 = arith.mulf %365, %371 : f32
    %373 = arith.index_cast %369 : i32 to index
    %374 = memref.load %arg4[%373] : memref<32xf32, #tpu.memory_space<smem>>
    %375 = arith.mulf %359, %372 : f32
    %376 = arith.subf %374, %375 : f32
    %377 = vector.extract_strided_slice %349 {offsets = [0, 0, 0], sizes = [1, 4, 128], strides = [1, 1, 1]} : vector<2x4x128xf32> to vector<1x4x128xf32>
    %378 = vector.shape_cast %377 : vector<1x4x128xf32> to vector<4x128xf32>
    %379 = vector.broadcast %372 : f32 to vector<4x128xf32>
    %380 = arith.mulf %378, %379 : vector<4x128xf32>
    %381 = vector.broadcast %376 : f32 to vector<4x128xf32>
    %382 = arith.addf %380, %381 : vector<4x128xf32>
    %c0_173 = arith.constant 0 : index
    %c6_174 = arith.constant 6 : index
    %c0_175 = arith.constant 0 : index
    %c0_176 = arith.constant 0 : index
    %c0_177 = arith.constant 0 : index
    %383 = vector.load %arg5[%c0_173, %c6_174, %c0_175, %c0_176, %c0_177] : memref<1x16x2x4x128xf32, #tpu.memory_space<vmem>>, vector<1x1x1x4x128xf32>
    %384 = vector.shape_cast %383 : vector<1x1x1x4x128xf32> to vector<4x128xf32>
    %385 = vector.shape_cast %382 : vector<4x128xf32> to vector<1x1x1x4x128xf32>
    tpu.vector_store %arg5[%c0_173, %c6_174, %c0_175, %c0_176, %c0_177], %385 {strides = array<i32>} : memref<1x16x2x4x128xf32, #tpu.memory_space<vmem>>, vector<1x1x1x4x128xf32>,
    %c16_i32_178 = arith.constant 16 : i32
    %386 = arith.muli %arg1, %c16_i32_178 : i32
    %c6_i32_179 = arith.constant 6 : i32
    %387 = arith.addi %386, %c6_i32_179 : i32
    %c2_i32_180 = arith.constant 2 : i32
    %388 = arith.muli %387, %c2_i32_180 : i32
    %c1_i32_181 = arith.constant 1 : i32
    %389 = arith.addi %388, %c1_i32_181 : i32
    %390 = arith.index_cast %389 : i32 to index
    %391 = memref.load %arg3[%390] : memref<32xf32, #tpu.memory_space<smem>>
    %392 = arith.mulf %365, %391 : f32
    %393 = arith.index_cast %389 : i32 to index
    %394 = memref.load %arg4[%393] : memref<32xf32, #tpu.memory_space<smem>>
    %395 = arith.mulf %359, %392 : f32
    %396 = arith.subf %394, %395 : f32
    %397 = vector.extract_strided_slice %349 {offsets = [1, 0, 0], sizes = [1, 4, 128], strides = [1, 1, 1]} : vector<2x4x128xf32> to vector<1x4x128xf32>
    %398 = vector.shape_cast %397 : vector<1x4x128xf32> to vector<4x128xf32>
    %399 = vector.broadcast %392 : f32 to vector<4x128xf32>
    %400 = arith.mulf %398, %399 : vector<4x128xf32>
    %401 = vector.broadcast %396 : f32 to vector<4x128xf32>
    %402 = arith.addf %400, %401 : vector<4x128xf32>
    %c0_182 = arith.constant 0 : index
    %c6_183 = arith.constant 6 : index
    %c1_184 = arith.constant 1 : index
    %c0_185 = arith.constant 0 : index
    %c0_186 = arith.constant 0 : index
    %403 = vector.load %arg5[%c0_182, %c6_183, %c1_184, %c0_185, %c0_186] : memref<1x16x2x4x128xf32, #tpu.memory_space<vmem>>, vector<1x1x1x4x128xf32>
    %404 = vector.shape_cast %403 : vector<1x1x1x4x128xf32> to vector<4x128xf32>
    %405 = vector.shape_cast %402 : vector<4x128xf32> to vector<1x1x1x4x128xf32>
    tpu.vector_store %arg5[%c0_182, %c6_183, %c1_184, %c0_185, %c0_186], %405 {strides = array<i32>} : memref<1x16x2x4x128xf32, #tpu.memory_space<vmem>>, vector<1x1x1x4x128xf32>,
    %c0_187 = arith.constant 0 : index
    %c7 = arith.constant 7 : index
    %c0_188 = arith.constant 0 : index
    %c0_189 = arith.constant 0 : index
    %c0_190 = arith.constant 0 : index
    %406 = vector.load %arg2[%c0_187, %c7, %c0_188, %c0_189, %c0_190] : memref<1x16x2x4x128xf32, #tpu.memory_space<vmem>>, vector<1x1x2x4x128xf32>
    %407 = vector.shape_cast %406 : vector<1x1x2x4x128xf32> to vector<2x4x128xf32>
    %408 = vector.shape_cast %407 : vector<2x4x128xf32> to vector<1x2x4x128xf32>
    %cst_191 = arith.constant dense<0.000000e+00> : vector<1xf32>
    %409 = vector.multi_reduction <add>, %408, %cst_191 [1, 2, 3] : vector<1x2x4x128xf32> to vector<1xf32>
    %410 = vector.shape_cast %409 : vector<1xf32> to vector<1x1x1x1xf32>
    %411 = vector.extract %410[0, 0, 0, 0] : f32 from vector<1x1x1x1xf32>
    %412 = arith.mulf %407, %407 : vector<2x4x128xf32>
    %413 = vector.shape_cast %412 : vector<2x4x128xf32> to vector<1x2x4x128xf32>
    %cst_192 = arith.constant dense<0.000000e+00> : vector<1xf32>
    %414 = vector.multi_reduction <add>, %413, %cst_192 [1, 2, 3] : vector<1x2x4x128xf32> to vector<1xf32>
    %415 = vector.shape_cast %414 : vector<1xf32> to vector<1x1x1x1xf32>
    %416 = vector.extract %415[0, 0, 0, 0] : f32 from vector<1x1x1x1xf32>
    %cst_193 = arith.constant 9.765625E-4 : f32
    %417 = arith.mulf %411, %cst_193 : f32
    %418 = arith.mulf %411, %417 : f32
    %419 = arith.subf %416, %418 : f32
    %cst_194 = arith.constant 0.000000e+00 : f32
    %420 = arith.maximumf %419, %cst_194 : f32
    %cst_195 = arith.constant 9.77517105E-4 : f32
    %421 = arith.mulf %420, %cst_195 : f32
    %cst_196 = arith.constant 9.99999974E-6 : f32
    %422 = arith.addf %421, %cst_196 : f32
    %423 = math.rsqrt %422 : f32
    %c16_i32_197 = arith.constant 16 : i32
    %424 = arith.muli %arg1, %c16_i32_197 : i32
    %c7_i32 = arith.constant 7 : i32
    %425 = arith.addi %424, %c7_i32 : i32
    %c2_i32_198 = arith.constant 2 : i32
    %426 = arith.muli %425, %c2_i32_198 : i32
    %c0_i32_199 = arith.constant 0 : i32
    %427 = arith.addi %426, %c0_i32_199 : i32
    %428 = arith.index_cast %427 : i32 to index
    %429 = memref.load %arg3[%428] : memref<32xf32, #tpu.memory_space<smem>>
    %430 = arith.mulf %423, %429 : f32
    %431 = arith.index_cast %427 : i32 to index
    %432 = memref.load %arg4[%431] : memref<32xf32, #tpu.memory_space<smem>>
    %433 = arith.mulf %417, %430 : f32
    %434 = arith.subf %432, %433 : f32
    %435 = vector.extract_strided_slice %407 {offsets = [0, 0, 0], sizes = [1, 4, 128], strides = [1, 1, 1]} : vector<2x4x128xf32> to vector<1x4x128xf32>
    %436 = vector.shape_cast %435 : vector<1x4x128xf32> to vector<4x128xf32>
    %437 = vector.broadcast %430 : f32 to vector<4x128xf32>
    %438 = arith.mulf %436, %437 : vector<4x128xf32>
    %439 = vector.broadcast %434 : f32 to vector<4x128xf32>
    %440 = arith.addf %438, %439 : vector<4x128xf32>
    %c0_200 = arith.constant 0 : index
    %c7_201 = arith.constant 7 : index
    %c0_202 = arith.constant 0 : index
    %c0_203 = arith.constant 0 : index
    %c0_204 = arith.constant 0 : index
    %441 = vector.load %arg5[%c0_200, %c7_201, %c0_202, %c0_203, %c0_204] : memref<1x16x2x4x128xf32, #tpu.memory_space<vmem>>, vector<1x1x1x4x128xf32>
    %442 = vector.shape_cast %441 : vector<1x1x1x4x128xf32> to vector<4x128xf32>
    %443 = vector.shape_cast %440 : vector<4x128xf32> to vector<1x1x1x4x128xf32>
    tpu.vector_store %arg5[%c0_200, %c7_201, %c0_202, %c0_203, %c0_204], %443 {strides = array<i32>} : memref<1x16x2x4x128xf32, #tpu.memory_space<vmem>>, vector<1x1x1x4x128xf32>,
    %c16_i32_205 = arith.constant 16 : i32
    %444 = arith.muli %arg1, %c16_i32_205 : i32
    %c7_i32_206 = arith.constant 7 : i32
    %445 = arith.addi %444, %c7_i32_206 : i32
    %c2_i32_207 = arith.constant 2 : i32
    %446 = arith.muli %445, %c2_i32_207 : i32
    %c1_i32_208 = arith.constant 1 : i32
    %447 = arith.addi %446, %c1_i32_208 : i32
    %448 = arith.index_cast %447 : i32 to index
    %449 = memref.load %arg3[%448] : memref<32xf32, #tpu.memory_space<smem>>
    %450 = arith.mulf %423, %449 : f32
    %451 = arith.index_cast %447 : i32 to index
    %452 = memref.load %arg4[%451] : memref<32xf32, #tpu.memory_space<smem>>
    %453 = arith.mulf %417, %450 : f32
    %454 = arith.subf %452, %453 : f32
    %455 = vector.extract_strided_slice %407 {offsets = [1, 0, 0], sizes = [1, 4, 128], strides = [1, 1, 1]} : vector<2x4x128xf32> to vector<1x4x128xf32>
    %456 = vector.shape_cast %455 : vector<1x4x128xf32> to vector<4x128xf32>
    %457 = vector.broadcast %450 : f32 to vector<4x128xf32>
    %458 = arith.mulf %456, %457 : vector<4x128xf32>
    %459 = vector.broadcast %454 : f32 to vector<4x128xf32>
    %460 = arith.addf %458, %459 : vector<4x128xf32>
    %c0_209 = arith.constant 0 : index
    %c7_210 = arith.constant 7 : index
    %c1_211 = arith.constant 1 : index
    %c0_212 = arith.constant 0 : index
    %c0_213 = arith.constant 0 : index
    %461 = vector.load %arg5[%c0_209, %c7_210, %c1_211, %c0_212, %c0_213] : memref<1x16x2x4x128xf32, #tpu.memory_space<vmem>>, vector<1x1x1x4x128xf32>
    %462 = vector.shape_cast %461 : vector<1x1x1x4x128xf32> to vector<4x128xf32>
    %463 = vector.shape_cast %460 : vector<4x128xf32> to vector<1x1x1x4x128xf32>
    tpu.vector_store %arg5[%c0_209, %c7_210, %c1_211, %c0_212, %c0_213], %463 {strides = array<i32>} : memref<1x16x2x4x128xf32, #tpu.memory_space<vmem>>, vector<1x1x1x4x128xf32>,
    %c0_214 = arith.constant 0 : index
    %c8 = arith.constant 8 : index
    %c0_215 = arith.constant 0 : index
    %c0_216 = arith.constant 0 : index
    %c0_217 = arith.constant 0 : index
    %464 = vector.load %arg2[%c0_214, %c8, %c0_215, %c0_216, %c0_217] : memref<1x16x2x4x128xf32, #tpu.memory_space<vmem>>, vector<1x1x2x4x128xf32>
    %465 = vector.shape_cast %464 : vector<1x1x2x4x128xf32> to vector<2x4x128xf32>
    %466 = vector.shape_cast %465 : vector<2x4x128xf32> to vector<1x2x4x128xf32>
    %cst_218 = arith.constant dense<0.000000e+00> : vector<1xf32>
    %467 = vector.multi_reduction <add>, %466, %cst_218 [1, 2, 3] : vector<1x2x4x128xf32> to vector<1xf32>
    %468 = vector.shape_cast %467 : vector<1xf32> to vector<1x1x1x1xf32>
    %469 = vector.extract %468[0, 0, 0, 0] : f32 from vector<1x1x1x1xf32>
    %470 = arith.mulf %465, %465 : vector<2x4x128xf32>
    %471 = vector.shape_cast %470 : vector<2x4x128xf32> to vector<1x2x4x128xf32>
    %cst_219 = arith.constant dense<0.000000e+00> : vector<1xf32>
    %472 = vector.multi_reduction <add>, %471, %cst_219 [1, 2, 3] : vector<1x2x4x128xf32> to vector<1xf32>
    %473 = vector.shape_cast %472 : vector<1xf32> to vector<1x1x1x1xf32>
    %474 = vector.extract %473[0, 0, 0, 0] : f32 from vector<1x1x1x1xf32>
    %cst_220 = arith.constant 9.765625E-4 : f32
    %475 = arith.mulf %469, %cst_220 : f32
    %476 = arith.mulf %469, %475 : f32
    %477 = arith.subf %474, %476 : f32
    %cst_221 = arith.constant 0.000000e+00 : f32
    %478 = arith.maximumf %477, %cst_221 : f32
    %cst_222 = arith.constant 9.77517105E-4 : f32
    %479 = arith.mulf %478, %cst_222 : f32
    %cst_223 = arith.constant 9.99999974E-6 : f32
    %480 = arith.addf %479, %cst_223 : f32
    %481 = math.rsqrt %480 : f32
    %c16_i32_224 = arith.constant 16 : i32
    %482 = arith.muli %arg1, %c16_i32_224 : i32
    %c8_i32 = arith.constant 8 : i32
    %483 = arith.addi %482, %c8_i32 : i32
    %c2_i32_225 = arith.constant 2 : i32
    %484 = arith.muli %483, %c2_i32_225 : i32
    %c0_i32_226 = arith.constant 0 : i32
    %485 = arith.addi %484, %c0_i32_226 : i32
    %486 = arith.index_cast %485 : i32 to index
    %487 = memref.load %arg3[%486] : memref<32xf32, #tpu.memory_space<smem>>
    %488 = arith.mulf %481, %487 : f32
    %489 = arith.index_cast %485 : i32 to index
    %490 = memref.load %arg4[%489] : memref<32xf32, #tpu.memory_space<smem>>
    %491 = arith.mulf %475, %488 : f32
    %492 = arith.subf %490, %491 : f32
    %493 = vector.extract_strided_slice %465 {offsets = [0, 0, 0], sizes = [1, 4, 128], strides = [1, 1, 1]} : vector<2x4x128xf32> to vector<1x4x128xf32>
    %494 = vector.shape_cast %493 : vector<1x4x128xf32> to vector<4x128xf32>
    %495 = vector.broadcast %488 : f32 to vector<4x128xf32>
    %496 = arith.mulf %494, %495 : vector<4x128xf32>
    %497 = vector.broadcast %492 : f32 to vector<4x128xf32>
    %498 = arith.addf %496, %497 : vector<4x128xf32>
    %c0_227 = arith.constant 0 : index
    %c8_228 = arith.constant 8 : index
    %c0_229 = arith.constant 0 : index
    %c0_230 = arith.constant 0 : index
    %c0_231 = arith.constant 0 : index
    %499 = vector.load %arg5[%c0_227, %c8_228, %c0_229, %c0_230, %c0_231] : memref<1x16x2x4x128xf32, #tpu.memory_space<vmem>>, vector<1x1x1x4x128xf32>
    %500 = vector.shape_cast %499 : vector<1x1x1x4x128xf32> to vector<4x128xf32>
    %501 = vector.shape_cast %498 : vector<4x128xf32> to vector<1x1x1x4x128xf32>
    tpu.vector_store %arg5[%c0_227, %c8_228, %c0_229, %c0_230, %c0_231], %501 {strides = array<i32>} : memref<1x16x2x4x128xf32, #tpu.memory_space<vmem>>, vector<1x1x1x4x128xf32>,
    %c16_i32_232 = arith.constant 16 : i32
    %502 = arith.muli %arg1, %c16_i32_232 : i32
    %c8_i32_233 = arith.constant 8 : i32
    %503 = arith.addi %502, %c8_i32_233 : i32
    %c2_i32_234 = arith.constant 2 : i32
    %504 = arith.muli %503, %c2_i32_234 : i32
    %c1_i32_235 = arith.constant 1 : i32
    %505 = arith.addi %504, %c1_i32_235 : i32
    %506 = arith.index_cast %505 : i32 to index
    %507 = memref.load %arg3[%506] : memref<32xf32, #tpu.memory_space<smem>>
    %508 = arith.mulf %481, %507 : f32
    %509 = arith.index_cast %505 : i32 to index
    %510 = memref.load %arg4[%509] : memref<32xf32, #tpu.memory_space<smem>>
    %511 = arith.mulf %475, %508 : f32
    %512 = arith.subf %510, %511 : f32
    %513 = vector.extract_strided_slice %465 {offsets = [1, 0, 0], sizes = [1, 4, 128], strides = [1, 1, 1]} : vector<2x4x128xf32> to vector<1x4x128xf32>
    %514 = vector.shape_cast %513 : vector<1x4x128xf32> to vector<4x128xf32>
    %515 = vector.broadcast %508 : f32 to vector<4x128xf32>
    %516 = arith.mulf %514, %515 : vector<4x128xf32>
    %517 = vector.broadcast %512 : f32 to vector<4x128xf32>
    %518 = arith.addf %516, %517 : vector<4x128xf32>
    %c0_236 = arith.constant 0 : index
    %c8_237 = arith.constant 8 : index
    %c1_238 = arith.constant 1 : index
    %c0_239 = arith.constant 0 : index
    %c0_240 = arith.constant 0 : index
    %519 = vector.load %arg5[%c0_236, %c8_237, %c1_238, %c0_239, %c0_240] : memref<1x16x2x4x128xf32, #tpu.memory_space<vmem>>, vector<1x1x1x4x128xf32>
    %520 = vector.shape_cast %519 : vector<1x1x1x4x128xf32> to vector<4x128xf32>
    %521 = vector.shape_cast %518 : vector<4x128xf32> to vector<1x1x1x4x128xf32>
    tpu.vector_store %arg5[%c0_236, %c8_237, %c1_238, %c0_239, %c0_240], %521 {strides = array<i32>} : memref<1x16x2x4x128xf32, #tpu.memory_space<vmem>>, vector<1x1x1x4x128xf32>,
    %c0_241 = arith.constant 0 : index
    %c9 = arith.constant 9 : index
    %c0_242 = arith.constant 0 : index
    %c0_243 = arith.constant 0 : index
    %c0_244 = arith.constant 0 : index
    %522 = vector.load %arg2[%c0_241, %c9, %c0_242, %c0_243, %c0_244] : memref<1x16x2x4x128xf32, #tpu.memory_space<vmem>>, vector<1x1x2x4x128xf32>
    %523 = vector.shape_cast %522 : vector<1x1x2x4x128xf32> to vector<2x4x128xf32>
    %524 = vector.shape_cast %523 : vector<2x4x128xf32> to vector<1x2x4x128xf32>
    %cst_245 = arith.constant dense<0.000000e+00> : vector<1xf32>
    %525 = vector.multi_reduction <add>, %524, %cst_245 [1, 2, 3] : vector<1x2x4x128xf32> to vector<1xf32>
    %526 = vector.shape_cast %525 : vector<1xf32> to vector<1x1x1x1xf32>
    %527 = vector.extract %526[0, 0, 0, 0] : f32 from vector<1x1x1x1xf32>
    %528 = arith.mulf %523, %523 : vector<2x4x128xf32>
    %529 = vector.shape_cast %528 : vector<2x4x128xf32> to vector<1x2x4x128xf32>
    %cst_246 = arith.constant dense<0.000000e+00> : vector<1xf32>
    %530 = vector.multi_reduction <add>, %529, %cst_246 [1, 2, 3] : vector<1x2x4x128xf32> to vector<1xf32>
    %531 = vector.shape_cast %530 : vector<1xf32> to vector<1x1x1x1xf32>
    %532 = vector.extract %531[0, 0, 0, 0] : f32 from vector<1x1x1x1xf32>
    %cst_247 = arith.constant 9.765625E-4 : f32
    %533 = arith.mulf %527, %cst_247 : f32
    %534 = arith.mulf %527, %533 : f32
    %535 = arith.subf %532, %534 : f32
    %cst_248 = arith.constant 0.000000e+00 : f32
    %536 = arith.maximumf %535, %cst_248 : f32
    %cst_249 = arith.constant 9.77517105E-4 : f32
    %537 = arith.mulf %536, %cst_249 : f32
    %cst_250 = arith.constant 9.99999974E-6 : f32
    %538 = arith.addf %537, %cst_250 : f32
    %539 = math.rsqrt %538 : f32
    %c16_i32_251 = arith.constant 16 : i32
    %540 = arith.muli %arg1, %c16_i32_251 : i32
    %c9_i32 = arith.constant 9 : i32
    %541 = arith.addi %540, %c9_i32 : i32
    %c2_i32_252 = arith.constant 2 : i32
    %542 = arith.muli %541, %c2_i32_252 : i32
    %c0_i32_253 = arith.constant 0 : i32
    %543 = arith.addi %542, %c0_i32_253 : i32
    %544 = arith.index_cast %543 : i32 to index
    %545 = memref.load %arg3[%544] : memref<32xf32, #tpu.memory_space<smem>>
    %546 = arith.mulf %539, %545 : f32
    %547 = arith.index_cast %543 : i32 to index
    %548 = memref.load %arg4[%547] : memref<32xf32, #tpu.memory_space<smem>>
    %549 = arith.mulf %533, %546 : f32
    %550 = arith.subf %548, %549 : f32
    %551 = vector.extract_strided_slice %523 {offsets = [0, 0, 0], sizes = [1, 4, 128], strides = [1, 1, 1]} : vector<2x4x128xf32> to vector<1x4x128xf32>
    %552 = vector.shape_cast %551 : vector<1x4x128xf32> to vector<4x128xf32>
    %553 = vector.broadcast %546 : f32 to vector<4x128xf32>
    %554 = arith.mulf %552, %553 : vector<4x128xf32>
    %555 = vector.broadcast %550 : f32 to vector<4x128xf32>
    %556 = arith.addf %554, %555 : vector<4x128xf32>
    %c0_254 = arith.constant 0 : index
    %c9_255 = arith.constant 9 : index
    %c0_256 = arith.constant 0 : index
    %c0_257 = arith.constant 0 : index
    %c0_258 = arith.constant 0 : index
    %557 = vector.load %arg5[%c0_254, %c9_255, %c0_256, %c0_257, %c0_258] : memref<1x16x2x4x128xf32, #tpu.memory_space<vmem>>, vector<1x1x1x4x128xf32>
    %558 = vector.shape_cast %557 : vector<1x1x1x4x128xf32> to vector<4x128xf32>
    %559 = vector.shape_cast %556 : vector<4x128xf32> to vector<1x1x1x4x128xf32>
    tpu.vector_store %arg5[%c0_254, %c9_255, %c0_256, %c0_257, %c0_258], %559 {strides = array<i32>} : memref<1x16x2x4x128xf32, #tpu.memory_space<vmem>>, vector<1x1x1x4x128xf32>,
    %c16_i32_259 = arith.constant 16 : i32
    %560 = arith.muli %arg1, %c16_i32_259 : i32
    %c9_i32_260 = arith.constant 9 : i32
    %561 = arith.addi %560, %c9_i32_260 : i32
    %c2_i32_261 = arith.constant 2 : i32
    %562 = arith.muli %561, %c2_i32_261 : i32
    %c1_i32_262 = arith.constant 1 : i32
    %563 = arith.addi %562, %c1_i32_262 : i32
    %564 = arith.index_cast %563 : i32 to index
    %565 = memref.load %arg3[%564] : memref<32xf32, #tpu.memory_space<smem>>
    %566 = arith.mulf %539, %565 : f32
    %567 = arith.index_cast %563 : i32 to index
    %568 = memref.load %arg4[%567] : memref<32xf32, #tpu.memory_space<smem>>
    %569 = arith.mulf %533, %566 : f32
    %570 = arith.subf %568, %569 : f32
    %571 = vector.extract_strided_slice %523 {offsets = [1, 0, 0], sizes = [1, 4, 128], strides = [1, 1, 1]} : vector<2x4x128xf32> to vector<1x4x128xf32>
    %572 = vector.shape_cast %571 : vector<1x4x128xf32> to vector<4x128xf32>
    %573 = vector.broadcast %566 : f32 to vector<4x128xf32>
    %574 = arith.mulf %572, %573 : vector<4x128xf32>
    %575 = vector.broadcast %570 : f32 to vector<4x128xf32>
    %576 = arith.addf %574, %575 : vector<4x128xf32>
    %c0_263 = arith.constant 0 : index
    %c9_264 = arith.constant 9 : index
    %c1_265 = arith.constant 1 : index
    %c0_266 = arith.constant 0 : index
    %c0_267 = arith.constant 0 : index
    %577 = vector.load %arg5[%c0_263, %c9_264, %c1_265, %c0_266, %c0_267] : memref<1x16x2x4x128xf32, #tpu.memory_space<vmem>>, vector<1x1x1x4x128xf32>
    %578 = vector.shape_cast %577 : vector<1x1x1x4x128xf32> to vector<4x128xf32>
    %579 = vector.shape_cast %576 : vector<4x128xf32> to vector<1x1x1x4x128xf32>
    tpu.vector_store %arg5[%c0_263, %c9_264, %c1_265, %c0_266, %c0_267], %579 {strides = array<i32>} : memref<1x16x2x4x128xf32, #tpu.memory_space<vmem>>, vector<1x1x1x4x128xf32>,
    %c0_268 = arith.constant 0 : index
    %c10 = arith.constant 10 : index
    %c0_269 = arith.constant 0 : index
    %c0_270 = arith.constant 0 : index
    %c0_271 = arith.constant 0 : index
    %580 = vector.load %arg2[%c0_268, %c10, %c0_269, %c0_270, %c0_271] : memref<1x16x2x4x128xf32, #tpu.memory_space<vmem>>, vector<1x1x2x4x128xf32>
    %581 = vector.shape_cast %580 : vector<1x1x2x4x128xf32> to vector<2x4x128xf32>
    %582 = vector.shape_cast %581 : vector<2x4x128xf32> to vector<1x2x4x128xf32>
    %cst_272 = arith.constant dense<0.000000e+00> : vector<1xf32>
    %583 = vector.multi_reduction <add>, %582, %cst_272 [1, 2, 3] : vector<1x2x4x128xf32> to vector<1xf32>
    %584 = vector.shape_cast %583 : vector<1xf32> to vector<1x1x1x1xf32>
    %585 = vector.extract %584[0, 0, 0, 0] : f32 from vector<1x1x1x1xf32>
    %586 = arith.mulf %581, %581 : vector<2x4x128xf32>
    %587 = vector.shape_cast %586 : vector<2x4x128xf32> to vector<1x2x4x128xf32>
    %cst_273 = arith.constant dense<0.000000e+00> : vector<1xf32>
    %588 = vector.multi_reduction <add>, %587, %cst_273 [1, 2, 3] : vector<1x2x4x128xf32> to vector<1xf32>
    %589 = vector.shape_cast %588 : vector<1xf32> to vector<1x1x1x1xf32>
    %590 = vector.extract %589[0, 0, 0, 0] : f32 from vector<1x1x1x1xf32>
    %cst_274 = arith.constant 9.765625E-4 : f32
    %591 = arith.mulf %585, %cst_274 : f32
    %592 = arith.mulf %585, %591 : f32
    %593 = arith.subf %590, %592 : f32
    %cst_275 = arith.constant 0.000000e+00 : f32
    %594 = arith.maximumf %593, %cst_275 : f32
    %cst_276 = arith.constant 9.77517105E-4 : f32
    %595 = arith.mulf %594, %cst_276 : f32
    %cst_277 = arith.constant 9.99999974E-6 : f32
    %596 = arith.addf %595, %cst_277 : f32
    %597 = math.rsqrt %596 : f32
    %c16_i32_278 = arith.constant 16 : i32
    %598 = arith.muli %arg1, %c16_i32_278 : i32
    %c10_i32 = arith.constant 10 : i32
    %599 = arith.addi %598, %c10_i32 : i32
    %c2_i32_279 = arith.constant 2 : i32
    %600 = arith.muli %599, %c2_i32_279 : i32
    %c0_i32_280 = arith.constant 0 : i32
    %601 = arith.addi %600, %c0_i32_280 : i32
    %602 = arith.index_cast %601 : i32 to index
    %603 = memref.load %arg3[%602] : memref<32xf32, #tpu.memory_space<smem>>
    %604 = arith.mulf %597, %603 : f32
    %605 = arith.index_cast %601 : i32 to index
    %606 = memref.load %arg4[%605] : memref<32xf32, #tpu.memory_space<smem>>
    %607 = arith.mulf %591, %604 : f32
    %608 = arith.subf %606, %607 : f32
    %609 = vector.extract_strided_slice %581 {offsets = [0, 0, 0], sizes = [1, 4, 128], strides = [1, 1, 1]} : vector<2x4x128xf32> to vector<1x4x128xf32>
    %610 = vector.shape_cast %609 : vector<1x4x128xf32> to vector<4x128xf32>
    %611 = vector.broadcast %604 : f32 to vector<4x128xf32>
    %612 = arith.mulf %610, %611 : vector<4x128xf32>
    %613 = vector.broadcast %608 : f32 to vector<4x128xf32>
    %614 = arith.addf %612, %613 : vector<4x128xf32>
    %c0_281 = arith.constant 0 : index
    %c10_282 = arith.constant 10 : index
    %c0_283 = arith.constant 0 : index
    %c0_284 = arith.constant 0 : index
    %c0_285 = arith.constant 0 : index
    %615 = vector.load %arg5[%c0_281, %c10_282, %c0_283, %c0_284, %c0_285] : memref<1x16x2x4x128xf32, #tpu.memory_space<vmem>>, vector<1x1x1x4x128xf32>
    %616 = vector.shape_cast %615 : vector<1x1x1x4x128xf32> to vector<4x128xf32>
    %617 = vector.shape_cast %614 : vector<4x128xf32> to vector<1x1x1x4x128xf32>
    tpu.vector_store %arg5[%c0_281, %c10_282, %c0_283, %c0_284, %c0_285], %617 {strides = array<i32>} : memref<1x16x2x4x128xf32, #tpu.memory_space<vmem>>, vector<1x1x1x4x128xf32>,
    %c16_i32_286 = arith.constant 16 : i32
    %618 = arith.muli %arg1, %c16_i32_286 : i32
    %c10_i32_287 = arith.constant 10 : i32
    %619 = arith.addi %618, %c10_i32_287 : i32
    %c2_i32_288 = arith.constant 2 : i32
    %620 = arith.muli %619, %c2_i32_288 : i32
    %c1_i32_289 = arith.constant 1 : i32
    %621 = arith.addi %620, %c1_i32_289 : i32
    %622 = arith.index_cast %621 : i32 to index
    %623 = memref.load %arg3[%622] : memref<32xf32, #tpu.memory_space<smem>>
    %624 = arith.mulf %597, %623 : f32
    %625 = arith.index_cast %621 : i32 to index
    %626 = memref.load %arg4[%625] : memref<32xf32, #tpu.memory_space<smem>>
    %627 = arith.mulf %591, %624 : f32
    %628 = arith.subf %626, %627 : f32
    %629 = vector.extract_strided_slice %581 {offsets = [1, 0, 0], sizes = [1, 4, 128], strides = [1, 1, 1]} : vector<2x4x128xf32> to vector<1x4x128xf32>
    %630 = vector.shape_cast %629 : vector<1x4x128xf32> to vector<4x128xf32>
    %631 = vector.broadcast %624 : f32 to vector<4x128xf32>
    %632 = arith.mulf %630, %631 : vector<4x128xf32>
    %633 = vector.broadcast %628 : f32 to vector<4x128xf32>
    %634 = arith.addf %632, %633 : vector<4x128xf32>
    %c0_290 = arith.constant 0 : index
    %c10_291 = arith.constant 10 : index
    %c1_292 = arith.constant 1 : index
    %c0_293 = arith.constant 0 : index
    %c0_294 = arith.constant 0 : index
    %635 = vector.load %arg5[%c0_290, %c10_291, %c1_292, %c0_293, %c0_294] : memref<1x16x2x4x128xf32, #tpu.memory_space<vmem>>, vector<1x1x1x4x128xf32>
    %636 = vector.shape_cast %635 : vector<1x1x1x4x128xf32> to vector<4x128xf32>
    %637 = vector.shape_cast %634 : vector<4x128xf32> to vector<1x1x1x4x128xf32>
    tpu.vector_store %arg5[%c0_290, %c10_291, %c1_292, %c0_293, %c0_294], %637 {strides = array<i32>} : memref<1x16x2x4x128xf32, #tpu.memory_space<vmem>>, vector<1x1x1x4x128xf32>,
    %c0_295 = arith.constant 0 : index
    %c11 = arith.constant 11 : index
    %c0_296 = arith.constant 0 : index
    %c0_297 = arith.constant 0 : index
    %c0_298 = arith.constant 0 : index
    %638 = vector.load %arg2[%c0_295, %c11, %c0_296, %c0_297, %c0_298] : memref<1x16x2x4x128xf32, #tpu.memory_space<vmem>>, vector<1x1x2x4x128xf32>
    %639 = vector.shape_cast %638 : vector<1x1x2x4x128xf32> to vector<2x4x128xf32>
    %640 = vector.shape_cast %639 : vector<2x4x128xf32> to vector<1x2x4x128xf32>
    %cst_299 = arith.constant dense<0.000000e+00> : vector<1xf32>
    %641 = vector.multi_reduction <add>, %640, %cst_299 [1, 2, 3] : vector<1x2x4x128xf32> to vector<1xf32>
    %642 = vector.shape_cast %641 : vector<1xf32> to vector<1x1x1x1xf32>
    %643 = vector.extract %642[0, 0, 0, 0] : f32 from vector<1x1x1x1xf32>
    %644 = arith.mulf %639, %639 : vector<2x4x128xf32>
    %645 = vector.shape_cast %644 : vector<2x4x128xf32> to vector<1x2x4x128xf32>
    %cst_300 = arith.constant dense<0.000000e+00> : vector<1xf32>
    %646 = vector.multi_reduction <add>, %645, %cst_300 [1, 2, 3] : vector<1x2x4x128xf32> to vector<1xf32>
    %647 = vector.shape_cast %646 : vector<1xf32> to vector<1x1x1x1xf32>
    %648 = vector.extract %647[0, 0, 0, 0] : f32 from vector<1x1x1x1xf32>
    %cst_301 = arith.constant 9.765625E-4 : f32
    %649 = arith.mulf %643, %cst_301 : f32
    %650 = arith.mulf %643, %649 : f32
    %651 = arith.subf %648, %650 : f32
    %cst_302 = arith.constant 0.000000e+00 : f32
    %652 = arith.maximumf %651, %cst_302 : f32
    %cst_303 = arith.constant 9.77517105E-4 : f32
    %653 = arith.mulf %652, %cst_303 : f32
    %cst_304 = arith.constant 9.99999974E-6 : f32
    %654 = arith.addf %653, %cst_304 : f32
    %655 = math.rsqrt %654 : f32
    %c16_i32_305 = arith.constant 16 : i32
    %656 = arith.muli %arg1, %c16_i32_305 : i32
    %c11_i32 = arith.constant 11 : i32
    %657 = arith.addi %656, %c11_i32 : i32
    %c2_i32_306 = arith.constant 2 : i32
    %658 = arith.muli %657, %c2_i32_306 : i32
    %c0_i32_307 = arith.constant 0 : i32
    %659 = arith.addi %658, %c0_i32_307 : i32
    %660 = arith.index_cast %659 : i32 to index
    %661 = memref.load %arg3[%660] : memref<32xf32, #tpu.memory_space<smem>>
    %662 = arith.mulf %655, %661 : f32
    %663 = arith.index_cast %659 : i32 to index
    %664 = memref.load %arg4[%663] : memref<32xf32, #tpu.memory_space<smem>>
    %665 = arith.mulf %649, %662 : f32
    %666 = arith.subf %664, %665 : f32
    %667 = vector.extract_strided_slice %639 {offsets = [0, 0, 0], sizes = [1, 4, 128], strides = [1, 1, 1]} : vector<2x4x128xf32> to vector<1x4x128xf32>
    %668 = vector.shape_cast %667 : vector<1x4x128xf32> to vector<4x128xf32>
    %669 = vector.broadcast %662 : f32 to vector<4x128xf32>
    %670 = arith.mulf %668, %669 : vector<4x128xf32>
    %671 = vector.broadcast %666 : f32 to vector<4x128xf32>
    %672 = arith.addf %670, %671 : vector<4x128xf32>
    %c0_308 = arith.constant 0 : index
    %c11_309 = arith.constant 11 : index
    %c0_310 = arith.constant 0 : index
    %c0_311 = arith.constant 0 : index
    %c0_312 = arith.constant 0 : index
    %673 = vector.load %arg5[%c0_308, %c11_309, %c0_310, %c0_311, %c0_312] : memref<1x16x2x4x128xf32, #tpu.memory_space<vmem>>, vector<1x1x1x4x128xf32>
    %674 = vector.shape_cast %673 : vector<1x1x1x4x128xf32> to vector<4x128xf32>
    %675 = vector.shape_cast %672 : vector<4x128xf32> to vector<1x1x1x4x128xf32>
    tpu.vector_store %arg5[%c0_308, %c11_309, %c0_310, %c0_311, %c0_312], %675 {strides = array<i32>} : memref<1x16x2x4x128xf32, #tpu.memory_space<vmem>>, vector<1x1x1x4x128xf32>,
    %c16_i32_313 = arith.constant 16 : i32
    %676 = arith.muli %arg1, %c16_i32_313 : i32
    %c11_i32_314 = arith.constant 11 : i32
    %677 = arith.addi %676, %c11_i32_314 : i32
    %c2_i32_315 = arith.constant 2 : i32
    %678 = arith.muli %677, %c2_i32_315 : i32
    %c1_i32_316 = arith.constant 1 : i32
    %679 = arith.addi %678, %c1_i32_316 : i32
    %680 = arith.index_cast %679 : i32 to index
    %681 = memref.load %arg3[%680] : memref<32xf32, #tpu.memory_space<smem>>
    %682 = arith.mulf %655, %681 : f32
    %683 = arith.index_cast %679 : i32 to index
    %684 = memref.load %arg4[%683] : memref<32xf32, #tpu.memory_space<smem>>
    %685 = arith.mulf %649, %682 : f32
    %686 = arith.subf %684, %685 : f32
    %687 = vector.extract_strided_slice %639 {offsets = [1, 0, 0], sizes = [1, 4, 128], strides = [1, 1, 1]} : vector<2x4x128xf32> to vector<1x4x128xf32>
    %688 = vector.shape_cast %687 : vector<1x4x128xf32> to vector<4x128xf32>
    %689 = vector.broadcast %682 : f32 to vector<4x128xf32>
    %690 = arith.mulf %688, %689 : vector<4x128xf32>
    %691 = vector.broadcast %686 : f32 to vector<4x128xf32>
    %692 = arith.addf %690, %691 : vector<4x128xf32>
    %c0_317 = arith.constant 0 : index
    %c11_318 = arith.constant 11 : index
    %c1_319 = arith.constant 1 : index
    %c0_320 = arith.constant 0 : index
    %c0_321 = arith.constant 0 : index
    %693 = vector.load %arg5[%c0_317, %c11_318, %c1_319, %c0_320, %c0_321] : memref<1x16x2x4x128xf32, #tpu.memory_space<vmem>>, vector<1x1x1x4x128xf32>
    %694 = vector.shape_cast %693 : vector<1x1x1x4x128xf32> to vector<4x128xf32>
    %695 = vector.shape_cast %692 : vector<4x128xf32> to vector<1x1x1x4x128xf32>
    tpu.vector_store %arg5[%c0_317, %c11_318, %c1_319, %c0_320, %c0_321], %695 {strides = array<i32>} : memref<1x16x2x4x128xf32, #tpu.memory_space<vmem>>, vector<1x1x1x4x128xf32>,
    %c0_322 = arith.constant 0 : index
    %c12 = arith.constant 12 : index
    %c0_323 = arith.constant 0 : index
    %c0_324 = arith.constant 0 : index
    %c0_325 = arith.constant 0 : index
    %696 = vector.load %arg2[%c0_322, %c12, %c0_323, %c0_324, %c0_325] : memref<1x16x2x4x128xf32, #tpu.memory_space<vmem>>, vector<1x1x2x4x128xf32>
    %697 = vector.shape_cast %696 : vector<1x1x2x4x128xf32> to vector<2x4x128xf32>
    %698 = vector.shape_cast %697 : vector<2x4x128xf32> to vector<1x2x4x128xf32>
    %cst_326 = arith.constant dense<0.000000e+00> : vector<1xf32>
    %699 = vector.multi_reduction <add>, %698, %cst_326 [1, 2, 3] : vector<1x2x4x128xf32> to vector<1xf32>
    %700 = vector.shape_cast %699 : vector<1xf32> to vector<1x1x1x1xf32>
    %701 = vector.extract %700[0, 0, 0, 0] : f32 from vector<1x1x1x1xf32>
    %702 = arith.mulf %697, %697 : vector<2x4x128xf32>
    %703 = vector.shape_cast %702 : vector<2x4x128xf32> to vector<1x2x4x128xf32>
    %cst_327 = arith.constant dense<0.000000e+00> : vector<1xf32>
    %704 = vector.multi_reduction <add>, %703, %cst_327 [1, 2, 3] : vector<1x2x4x128xf32> to vector<1xf32>
    %705 = vector.shape_cast %704 : vector<1xf32> to vector<1x1x1x1xf32>
    %706 = vector.extract %705[0, 0, 0, 0] : f32 from vector<1x1x1x1xf32>
    %cst_328 = arith.constant 9.765625E-4 : f32
    %707 = arith.mulf %701, %cst_328 : f32
    %708 = arith.mulf %701, %707 : f32
    %709 = arith.subf %706, %708 : f32
    %cst_329 = arith.constant 0.000000e+00 : f32
    %710 = arith.maximumf %709, %cst_329 : f32
    %cst_330 = arith.constant 9.77517105E-4 : f32
    %711 = arith.mulf %710, %cst_330 : f32
    %cst_331 = arith.constant 9.99999974E-6 : f32
    %712 = arith.addf %711, %cst_331 : f32
    %713 = math.rsqrt %712 : f32
    %c16_i32_332 = arith.constant 16 : i32
    %714 = arith.muli %arg1, %c16_i32_332 : i32
    %c12_i32 = arith.constant 12 : i32
    %715 = arith.addi %714, %c12_i32 : i32
    %c2_i32_333 = arith.constant 2 : i32
    %716 = arith.muli %715, %c2_i32_333 : i32
    %c0_i32_334 = arith.constant 0 : i32
    %717 = arith.addi %716, %c0_i32_334 : i32
    %718 = arith.index_cast %717 : i32 to index
    %719 = memref.load %arg3[%718] : memref<32xf32, #tpu.memory_space<smem>>
    %720 = arith.mulf %713, %719 : f32
    %721 = arith.index_cast %717 : i32 to index
    %722 = memref.load %arg4[%721] : memref<32xf32, #tpu.memory_space<smem>>
    %723 = arith.mulf %707, %720 : f32
    %724 = arith.subf %722, %723 : f32
    %725 = vector.extract_strided_slice %697 {offsets = [0, 0, 0], sizes = [1, 4, 128], strides = [1, 1, 1]} : vector<2x4x128xf32> to vector<1x4x128xf32>
    %726 = vector.shape_cast %725 : vector<1x4x128xf32> to vector<4x128xf32>
    %727 = vector.broadcast %720 : f32 to vector<4x128xf32>
    %728 = arith.mulf %726, %727 : vector<4x128xf32>
    %729 = vector.broadcast %724 : f32 to vector<4x128xf32>
    %730 = arith.addf %728, %729 : vector<4x128xf32>
    %c0_335 = arith.constant 0 : index
    %c12_336 = arith.constant 12 : index
    %c0_337 = arith.constant 0 : index
    %c0_338 = arith.constant 0 : index
    %c0_339 = arith.constant 0 : index
    %731 = vector.load %arg5[%c0_335, %c12_336, %c0_337, %c0_338, %c0_339] : memref<1x16x2x4x128xf32, #tpu.memory_space<vmem>>, vector<1x1x1x4x128xf32>
    %732 = vector.shape_cast %731 : vector<1x1x1x4x128xf32> to vector<4x128xf32>
    %733 = vector.shape_cast %730 : vector<4x128xf32> to vector<1x1x1x4x128xf32>
    tpu.vector_store %arg5[%c0_335, %c12_336, %c0_337, %c0_338, %c0_339], %733 {strides = array<i32>} : memref<1x16x2x4x128xf32, #tpu.memory_space<vmem>>, vector<1x1x1x4x128xf32>,
    %c16_i32_340 = arith.constant 16 : i32
    %734 = arith.muli %arg1, %c16_i32_340 : i32
    %c12_i32_341 = arith.constant 12 : i32
    %735 = arith.addi %734, %c12_i32_341 : i32
    %c2_i32_342 = arith.constant 2 : i32
    %736 = arith.muli %735, %c2_i32_342 : i32
    %c1_i32_343 = arith.constant 1 : i32
    %737 = arith.addi %736, %c1_i32_343 : i32
    %738 = arith.index_cast %737 : i32 to index
    %739 = memref.load %arg3[%738] : memref<32xf32, #tpu.memory_space<smem>>
    %740 = arith.mulf %713, %739 : f32
    %741 = arith.index_cast %737 : i32 to index
    %742 = memref.load %arg4[%741] : memref<32xf32, #tpu.memory_space<smem>>
    %743 = arith.mulf %707, %740 : f32
    %744 = arith.subf %742, %743 : f32
    %745 = vector.extract_strided_slice %697 {offsets = [1, 0, 0], sizes = [1, 4, 128], strides = [1, 1, 1]} : vector<2x4x128xf32> to vector<1x4x128xf32>
    %746 = vector.shape_cast %745 : vector<1x4x128xf32> to vector<4x128xf32>
    %747 = vector.broadcast %740 : f32 to vector<4x128xf32>
    %748 = arith.mulf %746, %747 : vector<4x128xf32>
    %749 = vector.broadcast %744 : f32 to vector<4x128xf32>
    %750 = arith.addf %748, %749 : vector<4x128xf32>
    %c0_344 = arith.constant 0 : index
    %c12_345 = arith.constant 12 : index
    %c1_346 = arith.constant 1 : index
    %c0_347 = arith.constant 0 : index
    %c0_348 = arith.constant 0 : index
    %751 = vector.load %arg5[%c0_344, %c12_345, %c1_346, %c0_347, %c0_348] : memref<1x16x2x4x128xf32, #tpu.memory_space<vmem>>, vector<1x1x1x4x128xf32>
    %752 = vector.shape_cast %751 : vector<1x1x1x4x128xf32> to vector<4x128xf32>
    %753 = vector.shape_cast %750 : vector<4x128xf32> to vector<1x1x1x4x128xf32>
    tpu.vector_store %arg5[%c0_344, %c12_345, %c1_346, %c0_347, %c0_348], %753 {strides = array<i32>} : memref<1x16x2x4x128xf32, #tpu.memory_space<vmem>>, vector<1x1x1x4x128xf32>,
    %c0_349 = arith.constant 0 : index
    %c13 = arith.constant 13 : index
    %c0_350 = arith.constant 0 : index
    %c0_351 = arith.constant 0 : index
    %c0_352 = arith.constant 0 : index
    %754 = vector.load %arg2[%c0_349, %c13, %c0_350, %c0_351, %c0_352] : memref<1x16x2x4x128xf32, #tpu.memory_space<vmem>>, vector<1x1x2x4x128xf32>
    %755 = vector.shape_cast %754 : vector<1x1x2x4x128xf32> to vector<2x4x128xf32>
    %756 = vector.shape_cast %755 : vector<2x4x128xf32> to vector<1x2x4x128xf32>
    %cst_353 = arith.constant dense<0.000000e+00> : vector<1xf32>
    %757 = vector.multi_reduction <add>, %756, %cst_353 [1, 2, 3] : vector<1x2x4x128xf32> to vector<1xf32>
    %758 = vector.shape_cast %757 : vector<1xf32> to vector<1x1x1x1xf32>
    %759 = vector.extract %758[0, 0, 0, 0] : f32 from vector<1x1x1x1xf32>
    %760 = arith.mulf %755, %755 : vector<2x4x128xf32>
    %761 = vector.shape_cast %760 : vector<2x4x128xf32> to vector<1x2x4x128xf32>
    %cst_354 = arith.constant dense<0.000000e+00> : vector<1xf32>
    %762 = vector.multi_reduction <add>, %761, %cst_354 [1, 2, 3] : vector<1x2x4x128xf32> to vector<1xf32>
    %763 = vector.shape_cast %762 : vector<1xf32> to vector<1x1x1x1xf32>
    %764 = vector.extract %763[0, 0, 0, 0] : f32 from vector<1x1x1x1xf32>
    %cst_355 = arith.constant 9.765625E-4 : f32
    %765 = arith.mulf %759, %cst_355 : f32
    %766 = arith.mulf %759, %765 : f32
    %767 = arith.subf %764, %766 : f32
    %cst_356 = arith.constant 0.000000e+00 : f32
    %768 = arith.maximumf %767, %cst_356 : f32
    %cst_357 = arith.constant 9.77517105E-4 : f32
    %769 = arith.mulf %768, %cst_357 : f32
    %cst_358 = arith.constant 9.99999974E-6 : f32
    %770 = arith.addf %769, %cst_358 : f32
    %771 = math.rsqrt %770 : f32
    %c16_i32_359 = arith.constant 16 : i32
    %772 = arith.muli %arg1, %c16_i32_359 : i32
    %c13_i32 = arith.constant 13 : i32
    %773 = arith.addi %772, %c13_i32 : i32
    %c2_i32_360 = arith.constant 2 : i32
    %774 = arith.muli %773, %c2_i32_360 : i32
    %c0_i32_361 = arith.constant 0 : i32
    %775 = arith.addi %774, %c0_i32_361 : i32
    %776 = arith.index_cast %775 : i32 to index
    %777 = memref.load %arg3[%776] : memref<32xf32, #tpu.memory_space<smem>>
    %778 = arith.mulf %771, %777 : f32
    %779 = arith.index_cast %775 : i32 to index
    %780 = memref.load %arg4[%779] : memref<32xf32, #tpu.memory_space<smem>>
    %781 = arith.mulf %765, %778 : f32
    %782 = arith.subf %780, %781 : f32
    %783 = vector.extract_strided_slice %755 {offsets = [0, 0, 0], sizes = [1, 4, 128], strides = [1, 1, 1]} : vector<2x4x128xf32> to vector<1x4x128xf32>
    %784 = vector.shape_cast %783 : vector<1x4x128xf32> to vector<4x128xf32>
    %785 = vector.broadcast %778 : f32 to vector<4x128xf32>
    %786 = arith.mulf %784, %785 : vector<4x128xf32>
    %787 = vector.broadcast %782 : f32 to vector<4x128xf32>
    %788 = arith.addf %786, %787 : vector<4x128xf32>
    %c0_362 = arith.constant 0 : index
    %c13_363 = arith.constant 13 : index
    %c0_364 = arith.constant 0 : index
    %c0_365 = arith.constant 0 : index
    %c0_366 = arith.constant 0 : index
    %789 = vector.load %arg5[%c0_362, %c13_363, %c0_364, %c0_365, %c0_366] : memref<1x16x2x4x128xf32, #tpu.memory_space<vmem>>, vector<1x1x1x4x128xf32>
    %790 = vector.shape_cast %789 : vector<1x1x1x4x128xf32> to vector<4x128xf32>
    %791 = vector.shape_cast %788 : vector<4x128xf32> to vector<1x1x1x4x128xf32>
    tpu.vector_store %arg5[%c0_362, %c13_363, %c0_364, %c0_365, %c0_366], %791 {strides = array<i32>} : memref<1x16x2x4x128xf32, #tpu.memory_space<vmem>>, vector<1x1x1x4x128xf32>,
    %c16_i32_367 = arith.constant 16 : i32
    %792 = arith.muli %arg1, %c16_i32_367 : i32
    %c13_i32_368 = arith.constant 13 : i32
    %793 = arith.addi %792, %c13_i32_368 : i32
    %c2_i32_369 = arith.constant 2 : i32
    %794 = arith.muli %793, %c2_i32_369 : i32
    %c1_i32_370 = arith.constant 1 : i32
    %795 = arith.addi %794, %c1_i32_370 : i32
    %796 = arith.index_cast %795 : i32 to index
    %797 = memref.load %arg3[%796] : memref<32xf32, #tpu.memory_space<smem>>
    %798 = arith.mulf %771, %797 : f32
    %799 = arith.index_cast %795 : i32 to index
    %800 = memref.load %arg4[%799] : memref<32xf32, #tpu.memory_space<smem>>
    %801 = arith.mulf %765, %798 : f32
    %802 = arith.subf %800, %801 : f32
    %803 = vector.extract_strided_slice %755 {offsets = [1, 0, 0], sizes = [1, 4, 128], strides = [1, 1, 1]} : vector<2x4x128xf32> to vector<1x4x128xf32>
    %804 = vector.shape_cast %803 : vector<1x4x128xf32> to vector<4x128xf32>
    %805 = vector.broadcast %798 : f32 to vector<4x128xf32>
    %806 = arith.mulf %804, %805 : vector<4x128xf32>
    %807 = vector.broadcast %802 : f32 to vector<4x128xf32>
    %808 = arith.addf %806, %807 : vector<4x128xf32>
    %c0_371 = arith.constant 0 : index
    %c13_372 = arith.constant 13 : index
    %c1_373 = arith.constant 1 : index
    %c0_374 = arith.constant 0 : index
    %c0_375 = arith.constant 0 : index
    %809 = vector.load %arg5[%c0_371, %c13_372, %c1_373, %c0_374, %c0_375] : memref<1x16x2x4x128xf32, #tpu.memory_space<vmem>>, vector<1x1x1x4x128xf32>
    %810 = vector.shape_cast %809 : vector<1x1x1x4x128xf32> to vector<4x128xf32>
    %811 = vector.shape_cast %808 : vector<4x128xf32> to vector<1x1x1x4x128xf32>
    tpu.vector_store %arg5[%c0_371, %c13_372, %c1_373, %c0_374, %c0_375], %811 {strides = array<i32>} : memref<1x16x2x4x128xf32, #tpu.memory_space<vmem>>, vector<1x1x1x4x128xf32>,
    %c0_376 = arith.constant 0 : index
    %c14 = arith.constant 14 : index
    %c0_377 = arith.constant 0 : index
    %c0_378 = arith.constant 0 : index
    %c0_379 = arith.constant 0 : index
    %812 = vector.load %arg2[%c0_376, %c14, %c0_377, %c0_378, %c0_379] : memref<1x16x2x4x128xf32, #tpu.memory_space<vmem>>, vector<1x1x2x4x128xf32>
    %813 = vector.shape_cast %812 : vector<1x1x2x4x128xf32> to vector<2x4x128xf32>
    %814 = vector.shape_cast %813 : vector<2x4x128xf32> to vector<1x2x4x128xf32>
    %cst_380 = arith.constant dense<0.000000e+00> : vector<1xf32>
    %815 = vector.multi_reduction <add>, %814, %cst_380 [1, 2, 3] : vector<1x2x4x128xf32> to vector<1xf32>
    %816 = vector.shape_cast %815 : vector<1xf32> to vector<1x1x1x1xf32>
    %817 = vector.extract %816[0, 0, 0, 0] : f32 from vector<1x1x1x1xf32>
    %818 = arith.mulf %813, %813 : vector<2x4x128xf32>
    %819 = vector.shape_cast %818 : vector<2x4x128xf32> to vector<1x2x4x128xf32>
    %cst_381 = arith.constant dense<0.000000e+00> : vector<1xf32>
    %820 = vector.multi_reduction <add>, %819, %cst_381 [1, 2, 3] : vector<1x2x4x128xf32> to vector<1xf32>
    %821 = vector.shape_cast %820 : vector<1xf32> to vector<1x1x1x1xf32>
    %822 = vector.extract %821[0, 0, 0, 0] : f32 from vector<1x1x1x1xf32>
    %cst_382 = arith.constant 9.765625E-4 : f32
    %823 = arith.mulf %817, %cst_382 : f32
    %824 = arith.mulf %817, %823 : f32
    %825 = arith.subf %822, %824 : f32
    %cst_383 = arith.constant 0.000000e+00 : f32
    %826 = arith.maximumf %825, %cst_383 : f32
    %cst_384 = arith.constant 9.77517105E-4 : f32
    %827 = arith.mulf %826, %cst_384 : f32
    %cst_385 = arith.constant 9.99999974E-6 : f32
    %828 = arith.addf %827, %cst_385 : f32
    %829 = math.rsqrt %828 : f32
    %c16_i32_386 = arith.constant 16 : i32
    %830 = arith.muli %arg1, %c16_i32_386 : i32
    %c14_i32 = arith.constant 14 : i32
    %831 = arith.addi %830, %c14_i32 : i32
    %c2_i32_387 = arith.constant 2 : i32
    %832 = arith.muli %831, %c2_i32_387 : i32
    %c0_i32_388 = arith.constant 0 : i32
    %833 = arith.addi %832, %c0_i32_388 : i32
    %834 = arith.index_cast %833 : i32 to index
    %835 = memref.load %arg3[%834] : memref<32xf32, #tpu.memory_space<smem>>
    %836 = arith.mulf %829, %835 : f32
    %837 = arith.index_cast %833 : i32 to index
    %838 = memref.load %arg4[%837] : memref<32xf32, #tpu.memory_space<smem>>
    %839 = arith.mulf %823, %836 : f32
    %840 = arith.subf %838, %839 : f32
    %841 = vector.extract_strided_slice %813 {offsets = [0, 0, 0], sizes = [1, 4, 128], strides = [1, 1, 1]} : vector<2x4x128xf32> to vector<1x4x128xf32>
    %842 = vector.shape_cast %841 : vector<1x4x128xf32> to vector<4x128xf32>
    %843 = vector.broadcast %836 : f32 to vector<4x128xf32>
    %844 = arith.mulf %842, %843 : vector<4x128xf32>
    %845 = vector.broadcast %840 : f32 to vector<4x128xf32>
    %846 = arith.addf %844, %845 : vector<4x128xf32>
    %c0_389 = arith.constant 0 : index
    %c14_390 = arith.constant 14 : index
    %c0_391 = arith.constant 0 : index
    %c0_392 = arith.constant 0 : index
    %c0_393 = arith.constant 0 : index
    %847 = vector.load %arg5[%c0_389, %c14_390, %c0_391, %c0_392, %c0_393] : memref<1x16x2x4x128xf32, #tpu.memory_space<vmem>>, vector<1x1x1x4x128xf32>
    %848 = vector.shape_cast %847 : vector<1x1x1x4x128xf32> to vector<4x128xf32>
    %849 = vector.shape_cast %846 : vector<4x128xf32> to vector<1x1x1x4x128xf32>
    tpu.vector_store %arg5[%c0_389, %c14_390, %c0_391, %c0_392, %c0_393], %849 {strides = array<i32>} : memref<1x16x2x4x128xf32, #tpu.memory_space<vmem>>, vector<1x1x1x4x128xf32>,
    %c16_i32_394 = arith.constant 16 : i32
    %850 = arith.muli %arg1, %c16_i32_394 : i32
    %c14_i32_395 = arith.constant 14 : i32
    %851 = arith.addi %850, %c14_i32_395 : i32
    %c2_i32_396 = arith.constant 2 : i32
    %852 = arith.muli %851, %c2_i32_396 : i32
    %c1_i32_397 = arith.constant 1 : i32
    %853 = arith.addi %852, %c1_i32_397 : i32
    %854 = arith.index_cast %853 : i32 to index
    %855 = memref.load %arg3[%854] : memref<32xf32, #tpu.memory_space<smem>>
    %856 = arith.mulf %829, %855 : f32
    %857 = arith.index_cast %853 : i32 to index
    %858 = memref.load %arg4[%857] : memref<32xf32, #tpu.memory_space<smem>>
    %859 = arith.mulf %823, %856 : f32
    %860 = arith.subf %858, %859 : f32
    %861 = vector.extract_strided_slice %813 {offsets = [1, 0, 0], sizes = [1, 4, 128], strides = [1, 1, 1]} : vector<2x4x128xf32> to vector<1x4x128xf32>
    %862 = vector.shape_cast %861 : vector<1x4x128xf32> to vector<4x128xf32>
    %863 = vector.broadcast %856 : f32 to vector<4x128xf32>
    %864 = arith.mulf %862, %863 : vector<4x128xf32>
    %865 = vector.broadcast %860 : f32 to vector<4x128xf32>
    %866 = arith.addf %864, %865 : vector<4x128xf32>
    %c0_398 = arith.constant 0 : index
    %c14_399 = arith.constant 14 : index
    %c1_400 = arith.constant 1 : index
    %c0_401 = arith.constant 0 : index
    %c0_402 = arith.constant 0 : index
    %867 = vector.load %arg5[%c0_398, %c14_399, %c1_400, %c0_401, %c0_402] : memref<1x16x2x4x128xf32, #tpu.memory_space<vmem>>, vector<1x1x1x4x128xf32>
    %868 = vector.shape_cast %867 : vector<1x1x1x4x128xf32> to vector<4x128xf32>
    %869 = vector.shape_cast %866 : vector<4x128xf32> to vector<1x1x1x4x128xf32>
    tpu.vector_store %arg5[%c0_398, %c14_399, %c1_400, %c0_401, %c0_402], %869 {strides = array<i32>} : memref<1x16x2x4x128xf32, #tpu.memory_space<vmem>>, vector<1x1x1x4x128xf32>,
    %c0_403 = arith.constant 0 : index
    %c15 = arith.constant 15 : index
    %c0_404 = arith.constant 0 : index
    %c0_405 = arith.constant 0 : index
    %c0_406 = arith.constant 0 : index
    %870 = vector.load %arg2[%c0_403, %c15, %c0_404, %c0_405, %c0_406] : memref<1x16x2x4x128xf32, #tpu.memory_space<vmem>>, vector<1x1x2x4x128xf32>
    %871 = vector.shape_cast %870 : vector<1x1x2x4x128xf32> to vector<2x4x128xf32>
    %872 = vector.shape_cast %871 : vector<2x4x128xf32> to vector<1x2x4x128xf32>
    %cst_407 = arith.constant dense<0.000000e+00> : vector<1xf32>
    %873 = vector.multi_reduction <add>, %872, %cst_407 [1, 2, 3] : vector<1x2x4x128xf32> to vector<1xf32>
    %874 = vector.shape_cast %873 : vector<1xf32> to vector<1x1x1x1xf32>
    %875 = vector.extract %874[0, 0, 0, 0] : f32 from vector<1x1x1x1xf32>
    %876 = arith.mulf %871, %871 : vector<2x4x128xf32>
    %877 = vector.shape_cast %876 : vector<2x4x128xf32> to vector<1x2x4x128xf32>
    %cst_408 = arith.constant dense<0.000000e+00> : vector<1xf32>
    %878 = vector.multi_reduction <add>, %877, %cst_408 [1, 2, 3] : vector<1x2x4x128xf32> to vector<1xf32>
    %879 = vector.shape_cast %878 : vector<1xf32> to vector<1x1x1x1xf32>
    %880 = vector.extract %879[0, 0, 0, 0] : f32 from vector<1x1x1x1xf32>
    %cst_409 = arith.constant 9.765625E-4 : f32
    %881 = arith.mulf %875, %cst_409 : f32
    %882 = arith.mulf %875, %881 : f32
    %883 = arith.subf %880, %882 : f32
    %cst_410 = arith.constant 0.000000e+00 : f32
    %884 = arith.maximumf %883, %cst_410 : f32
    %cst_411 = arith.constant 9.77517105E-4 : f32
    %885 = arith.mulf %884, %cst_411 : f32
    %cst_412 = arith.constant 9.99999974E-6 : f32
    %886 = arith.addf %885, %cst_412 : f32
    %887 = math.rsqrt %886 : f32
    %c16_i32_413 = arith.constant 16 : i32
    %888 = arith.muli %arg1, %c16_i32_413 : i32
    %c15_i32 = arith.constant 15 : i32
    %889 = arith.addi %888, %c15_i32 : i32
    %c2_i32_414 = arith.constant 2 : i32
    %890 = arith.muli %889, %c2_i32_414 : i32
    %c0_i32_415 = arith.constant 0 : i32
    %891 = arith.addi %890, %c0_i32_415 : i32
    %892 = arith.index_cast %891 : i32 to index
    %893 = memref.load %arg3[%892] : memref<32xf32, #tpu.memory_space<smem>>
    %894 = arith.mulf %887, %893 : f32
    %895 = arith.index_cast %891 : i32 to index
    %896 = memref.load %arg4[%895] : memref<32xf32, #tpu.memory_space<smem>>
    %897 = arith.mulf %881, %894 : f32
    %898 = arith.subf %896, %897 : f32
    %899 = vector.extract_strided_slice %871 {offsets = [0, 0, 0], sizes = [1, 4, 128], strides = [1, 1, 1]} : vector<2x4x128xf32> to vector<1x4x128xf32>
    %900 = vector.shape_cast %899 : vector<1x4x128xf32> to vector<4x128xf32>
    %901 = vector.broadcast %894 : f32 to vector<4x128xf32>
    %902 = arith.mulf %900, %901 : vector<4x128xf32>
    %903 = vector.broadcast %898 : f32 to vector<4x128xf32>
    %904 = arith.addf %902, %903 : vector<4x128xf32>
    %c0_416 = arith.constant 0 : index
    %c15_417 = arith.constant 15 : index
    %c0_418 = arith.constant 0 : index
    %c0_419 = arith.constant 0 : index
    %c0_420 = arith.constant 0 : index
    %905 = vector.load %arg5[%c0_416, %c15_417, %c0_418, %c0_419, %c0_420] : memref<1x16x2x4x128xf32, #tpu.memory_space<vmem>>, vector<1x1x1x4x128xf32>
    %906 = vector.shape_cast %905 : vector<1x1x1x4x128xf32> to vector<4x128xf32>
    %907 = vector.shape_cast %904 : vector<4x128xf32> to vector<1x1x1x4x128xf32>
    tpu.vector_store %arg5[%c0_416, %c15_417, %c0_418, %c0_419, %c0_420], %907 {strides = array<i32>} : memref<1x16x2x4x128xf32, #tpu.memory_space<vmem>>, vector<1x1x1x4x128xf32>,
    %c16_i32_421 = arith.constant 16 : i32
    %908 = arith.muli %arg1, %c16_i32_421 : i32
    %c15_i32_422 = arith.constant 15 : i32
    %909 = arith.addi %908, %c15_i32_422 : i32
    %c2_i32_423 = arith.constant 2 : i32
    %910 = arith.muli %909, %c2_i32_423 : i32
    %c1_i32_424 = arith.constant 1 : i32
    %911 = arith.addi %910, %c1_i32_424 : i32
    %912 = arith.index_cast %911 : i32 to index
    %913 = memref.load %arg3[%912] : memref<32xf32, #tpu.memory_space<smem>>
    %914 = arith.mulf %887, %913 : f32
    %915 = arith.index_cast %911 : i32 to index
    %916 = memref.load %arg4[%915] : memref<32xf32, #tpu.memory_space<smem>>
    %917 = arith.mulf %881, %914 : f32
    %918 = arith.subf %916, %917 : f32
    %919 = vector.extract_strided_slice %871 {offsets = [1, 0, 0], sizes = [1, 4, 128], strides = [1, 1, 1]} : vector<2x4x128xf32> to vector<1x4x128xf32>
    %920 = vector.shape_cast %919 : vector<1x4x128xf32> to vector<4x128xf32>
    %921 = vector.broadcast %914 : f32 to vector<4x128xf32>
    %922 = arith.mulf %920, %921 : vector<4x128xf32>
    %923 = vector.broadcast %918 : f32 to vector<4x128xf32>
    %924 = arith.addf %922, %923 : vector<4x128xf32>
    %c0_425 = arith.constant 0 : index
    %c15_426 = arith.constant 15 : index
    %c1_427 = arith.constant 1 : index
    %c0_428 = arith.constant 0 : index
    %c0_429 = arith.constant 0 : index
    %925 = vector.load %arg5[%c0_425, %c15_426, %c1_427, %c0_428, %c0_429] : memref<1x16x2x4x128xf32, #tpu.memory_space<vmem>>, vector<1x1x1x4x128xf32>
    %926 = vector.shape_cast %925 : vector<1x1x1x4x128xf32> to vector<4x128xf32>
    %927 = vector.shape_cast %924 : vector<4x128xf32> to vector<1x1x1x4x128xf32>
    tpu.vector_store %arg5[%c0_425, %c15_426, %c1_427, %c0_428, %c0_429], %927 {strides = array<i32>} : memref<1x16x2x4x128xf32, #tpu.memory_space<vmem>>, vector<1x1x1x4x128xf32>,
    return
  }
  func.func @transform_0(%arg0: i32, %arg1: i32) -> (i32, i32, i32, i32, i32) {
    %c0_i32 = arith.constant 0 : i32
    %c0_i32_0 = arith.constant 0 : i32
    %c0_i32_1 = arith.constant 0 : i32
    %c0_i32_2 = arith.constant 0 : i32
    return %arg0, %arg1, %c0_i32, %c0_i32_0, %c0_i32_1 : i32, i32, i32, i32, i32
  }
  func.func @transform_1(%arg0: i32, %arg1: i32) -> i32 {
    %c0_i32 = arith.constant 0 : i32
    %c0_i32_0 = arith.constant 0 : i32
    return %c0_i32 : i32
  }
  func.func @transform_2(%arg0: i32, %arg1: i32) -> i32 {
    %c0_i32 = arith.constant 0 : i32
    %c0_i32_0 = arith.constant 0 : i32
    return %c0_i32 : i32
  }
  func.func @transform_3(%arg0: i32, %arg1: i32) -> (i32, i32, i32, i32, i32) {
    %c0_i32 = arith.constant 0 : i32
    %c0_i32_0 = arith.constant 0 : i32
    %c0_i32_1 = arith.constant 0 : i32
    %c0_i32_2 = arith.constant 0 : i32
    return %arg0, %arg1, %c0_i32, %c0_i32_0, %c0_i32_1 : i32, i32, i32, i32, i32
  }
}

</mosaic_0001>

<llo_original>
// kernel: tpu_custom_call.1
$region0: #{tpu_custom_call.1}
  #allocation0 [shape = 'u32[]', space=smem, size = 0x4, offset = 0x4, fixed_abs, tag = 'smem constant byte address 0x4 - core index']
  #allocation1 [shape = 'u32[144,128]{1,0:T(1,128)}', space=vmem, size = 0x12000, scoped, tag = 'internal scratch']
  %s0 = inlined_call_operand.hbm [shape: f32[2,16,2,4,128], index: 0, kind: input, shape index: {}]
  %s1 = inlined_call_operand.vmem [shape: f32[32], index: 1, kind: input, shape index: {}]
  %s2 = inlined_call_operand.vmem [shape: f32[32], index: 2, kind: input, shape index: {}]
  %s3 = inlined_call_operand.hbm [shape: f32[2,16,2,4,128], index: 3, kind: output, shape index: {}]
  %s4 = sld [smem:[#allocation0]]
  $region57: #{tpu_custom_call.1} parent=0
    _
  %s6 = ssub.s32 1, %s4
  %s7 = scalar_select 0, %s6, %s4
  $region1: #{tpu_custom_call.1} parent=0
    #allocation2 [shape = 'u8[131072]{0}', space=vmem, size = 0x20000, scoped, tag = 'input window, operand 0']
    #allocation3 [shape = 's32[2]{0}', space=sflag, size = 0x8, scoped, tag = 'scoped memory for tpu_custom_call.1']
    #allocation4 [shape = 's32[2]{0}', space=sflag, size = 0x8, scoped, tag = 'scoped memory for tpu_custom_call.1']
    #allocation5 [shape = 's32[2]{0}', space=sflag, size = 0x8, scoped, tag = 'scoped memory for tpu_custom_call.1']
    #allocation6 [shape = 'u8[512]{0}', space=smem, size = 0x200, scoped, tag = 'input window, operand 1, single buffered']
    #allocation7 [shape = 'u8[512]{0}', space=smem, size = 0x200, scoped, tag = 'input window, operand 2, single buffered']
    #allocation8 [shape = 's32[1]{0}', space=sflag, size = 0x4, scoped, tag = 'scoped memory for tpu_custom_call.1']
    #allocation9 [shape = 'u8[131072]{0}', space=vmem, size = 0x20000, scoped, tag = 'output window, operand 0']
    %8 = vsyncpa [#allocation3], 0
    %s9 = scalar_lea.sflag [#allocation3], 1
    %10 = vsyncpa %s9, 0
    %11 = vsyncpa [#allocation5], 0
    %12 = vsyncpa [#allocation8], 0
    %13 = vsyncpa [#allocation4], 0
    %s14 = scalar_lea.sflag [#allocation4], 1
    %15 = vsyncpa %s14, 0
    loop: start=0, step=1, limit=4
    $region2: #{tpu_custom_call.1} parent=1 // loop_pre_header
      _
    $region3: #{tpu_custom_call.1} parent=1 // loop_header
      %s17 = sphi 0, %s21
      %p18 = scmp.ge.s32.totalorder %s17, 4
      %s24 = sphi 0, %s36
      %s25 = sphi 0, %s32
      %s26 = sphi 0, %s24
      %s27 = sphi 0, %s25
      %s28 = sphi 0, %s26
      %s29 = sphi 0, %s27
      %s41 = sphi 0, %s43
      %s44 = sphi 0, %s41
      %s45 = sphi 0, %s44
      %s61 = sphi 0, %s45
      %s65 = sphi 0, %s65
      %s67 = sphi 0, %s65
      %s68 = sphi 0, %s67
      %s82 = sphi 0, %s68
      %s86 = sphi 0, %s86
      %s88 = sphi 0, %s86
      %s89 = sphi 0, %s88
      %s103 = sphi 0, %s89
      %s111 = sphi 0, %s113
      %s114 = sphi 0, %s111
      %s115 = sphi 0, %s114
      %s131 = sphi 0, %s115
    $region4: #{tpu_custom_call.1} parent=1 // loop_header_branch
      %20 = sbr.rel (%p18) target = $region8
    $region5: #{tpu_custom_call.1} parent=1 // loop_body
      %s22 = ssub.s32 %s17, 1
      %s23 = ssub.s32 %s17, 2
      %s30 = sadd.s32 1, %s25
      %p31 = scmp.ge.s32.totalorder %s30, 1
      %s32 = scalar_select %p31, 0, %s30
      %s33 = sadd.s32 1, %s24
      %s34 = scalar_select %p31, %s33, %s24
      %p35 = scmp.ge.s32.totalorder %s34, 2
      %s36 = scalar_select %p35, 0, %s34
      %s37 = ssub.s32 %s24, %s36
      %s38 = ssub.s32 %s25, %s32
      %s39 = sor.u32 %s37, %s38
      %p40 = scmp.eq.s32.totalorder %s39, 0
      %s42 = sadd.s32 %s41, 1
      %s43 = scalar_select %p40, %s41, %s42
      %p46 = pneg %p40
      %p47 = scmp.eq.s32.totalorder %s17, 1
      %p48 = por %p46, %p47
      %p49 = scmp.ne.s32.totalorder %s41, %s44
      %p50 = scmp.eq.s32.totalorder %s17, 0
      %p51 = por %p49, %p50
      %p52 = scmp.ne.s32.totalorder %s41, %s44
      %p53 = scmp.eq.s32.totalorder %s22, 1
      %p54 = por %p52, %p53
      %p55 = scmp.ne.s32.totalorder %s44, %s45
      %p56 = scmp.eq.s32.totalorder %s22, 0
      %p57 = por %p55, %p56
      %p58 = scmp.ne.s32.totalorder %s44, %s45
      %p59 = scmp.eq.s32.totalorder %s23, 1
      %p60 = por %p58, %p59
      %p62 = scmp.ne.s32.totalorder %s45, %s61
      %p63 = scmp.eq.s32.totalorder %s23, 0
      %p64 = por %p62, %p63
      %s66 = sadd.s32 %s65, 1
      %p69 = scmp.eq.s32.totalorder %s17, 1
      %p70 = scmp.ne.s32.totalorder %s65, %s67
      %p71 = scmp.eq.s32.totalorder %s17, 0
      %p72 = por %p70, %p71
      %p73 = scmp.ne.s32.totalorder %s65, %s67
      %p74 = scmp.eq.s32.totalorder %s22, 1
      %p75 = por %p73, %p74
      %p76 = scmp.ne.s32.totalorder %s67, %s68
      %p77 = scmp.eq.s32.totalorder %s22, 0
      %p78 = por %p76, %p77
      %p79 = scmp.ne.s32.totalorder %s67, %s68
      %p80 = scmp.eq.s32.totalorder %s23, 1
      %p81 = por %p79, %p80
      %p83 = scmp.ne.s32.totalorder %s68, %s82
      %p84 = scmp.eq.s32.totalorder %s23, 0
      %p85 = por %p83, %p84
      %s87 = sadd.s32 %s86, 1
      %p90 = scmp.eq.s32.totalorder %s17, 1
      %p91 = scmp.ne.s32.totalorder %s86, %s88
      %p92 = scmp.eq.s32.totalorder %s17, 0
      %p93 = por %p91, %p92
      %p94 = scmp.ne.s32.totalorder %s86, %s88
      %p95 = scmp.eq.s32.totalorder %s22, 1
      %p96 = por %p94, %p95
      %p97 = scmp.ne.s32.totalorder %s88, %s89
      %p98 = scmp.eq.s32.totalorder %s22, 0
      %p99 = por %p97, %p98
      %p100 = scmp.ne.s32.totalorder %s88, %s89
      %p101 = scmp.eq.s32.totalorder %s23, 1
      %p102 = por %p100, %p101
      %p104 = scmp.ne.s32.totalorder %s89, %s103
      %p105 = scmp.eq.s32.totalorder %s23, 0
      %p106 = por %p104, %p105
      %s107 = ssub.s32 %s24, %s36
      %s108 = ssub.s32 %s25, %s32
      %s109 = sor.u32 %s107, %s108
      %p110 = scmp.eq.s32.totalorder %s109, 0
      %s112 = sadd.s32 %s111, 1
      %s113 = scalar_select %p110, %s111, %s112
      %p116 = pneg %p110
      %p117 = scmp.eq.s32.totalorder %s17, 1
      %p118 = por %p116, %p117
      %p119 = scmp.ne.s32.totalorder %s111, %s114
      %p120 = scmp.eq.s32.totalorder %s17, 0
      %p121 = por %p119, %p120
      %p122 = scmp.ne.s32.totalorder %s111, %s114
      %p123 = scmp.eq.s32.totalorder %s22, 1
      %p124 = por %p122, %p123
      %p125 = scmp.ne.s32.totalorder %s114, %s115
      %p126 = scmp.eq.s32.totalorder %s22, 0
      %p127 = por %p125, %p126
      %p128 = scmp.ne.s32.totalorder %s114, %s115
      %p129 = scmp.eq.s32.totalorder %s23, 1
      %p130 = por %p128, %p129
      %p132 = scmp.ne.s32.totalorder %s115, %s131
      %p133 = scmp.eq.s32.totalorder %s23, 0
      %p134 = por %p132, %p133
      %p135 = scmp.le.s32.totalorder 1, %s17
      %p136 = scmp.lt.s32.totalorder %s17, 3
      %p137 = pnand %p135, %p136
      %p138 = pneg %p137
      // Predicated region
      $region9: #{tpu_custom_call.1} parent=5 // pred_check
        _
      $region10: #{tpu_custom_call.1} parent=5 // pred_check_branch
        %140 = sbr.rel (%p137) target = $region12
      $region11: #{tpu_custom_call.1} parent=5 // pred_region
        %s141 = ssub.s32 %s17, 1
        // Predicated region
        $region13: #{tpu_custom_call.1} parent=11 // pred_check
          %p142 = pneg %p78
        $region14: #{tpu_custom_call.1} parent=11 // pred_check_branch
          %144 = sbr.rel (%p142) target = $region16
        $region15: #{tpu_custom_call.1} parent=11 // pred_region
          %s146 = ssub.s32 16, 16
          %147 = vsyncadd [#allocation5], %s146
          %s149 = sshll.u32 %s1, 4
          %s150 = int_to_ptr.vmem [resolvable:$true] %s149
          %152 = dma.vmem_to_smem %s150, 16, [#allocation6], [#allocation5]
        $region16: #{tpu_custom_call.1} parent=11 // pred_fallthru
          _
        // Predicated region
        $region17: #{tpu_custom_call.1} parent=11 // pred_check
          %p153 = pneg %p99
        $region18: #{tpu_custom_call.1} parent=11 // pred_check_branch
          %155 = sbr.rel (%p153) target = $region20
        $region19: #{tpu_custom_call.1} parent=11 // pred_region
          %s157 = ssub.s32 16, 16
          %158 = vsyncadd [#allocation8], %s157
          %s160 = sshll.u32 %s2, 4
          %s161 = int_to_ptr.vmem [resolvable:$true] %s160
          %163 = dma.vmem_to_smem %s161, 16, [#allocation7], [#allocation8]
        $region20: #{tpu_custom_call.1} parent=11 // pred_fallthru
          _
      $region12: #{tpu_custom_call.1} parent=5 // pred_fallthru
        _
      %p164 = scmp.lt.s32.totalorder %s17, 2
      // Predicated region
      $region21: #{tpu_custom_call.1} parent=5 // pred_check
        %p165 = pneg %p164
      $region22: #{tpu_custom_call.1} parent=5 // pred_check_branch
        %167 = sbr.rel (%p165) target = $region24
      $region23: #{tpu_custom_call.1} parent=5 // pred_region
        // Predicated region
        $region25: #{tpu_custom_call.1} parent=23 // pred_check
          %p168 = pneg %p51
        $region26: #{tpu_custom_call.1} parent=23 // pred_check_branch
          %170 = sbr.rel (%p168) target = $region28
        $region27: #{tpu_custom_call.1} parent=23 // pred_region
          %s171 = sand.u32 %s41, 1
          %s172 = scalar_lea.sflag [#allocation3], %s171
          %s173 = sand.u32 %s41, 1
          %s174 = smul.addr %s173, 128
          %s175 = scalar_lea.vmem [#allocation2], %s174
          %s176 = smul.u32 16, %s25
          %s178 = ssub.s32 2048, 2048
          %179 = vsyncadd %s172, %s178
          %s180 = smul.addr %s176, 2
          %s181 = smul.addr %s24, 32
          %s182 = sadd.s32 %s180, %s181
          %s183 = smul.addr %s182, 64
          %s184 = scalar_lea.hbm %s0, %s183
          %s185 = sshll.u32 %s175, 4
          %s186 = int_to_ptr.vmem [resolvable:$true] %s185
          %191 = dma.hbm_to_vmem [thread:$0]  %s184, 2048, %s186, %s172, 64, 64, 4
        $region28: #{tpu_custom_call.1} parent=23 // pred_fallthru
          _
      $region24: #{tpu_custom_call.1} parent=5 // pred_fallthru
        _
      %p192 = scmp.le.s32.totalorder 1, %s17
      %p193 = scmp.lt.s32.totalorder %s17, 3
      %p194 = pnand %p192, %p193
      %p195 = pneg %p194
      // Predicated region
      $region29: #{tpu_custom_call.1} parent=5 // pred_check
        _
      $region30: #{tpu_custom_call.1} parent=5 // pred_check_branch
        %197 = sbr.rel (%p194) target = $region32
      $region31: #{tpu_custom_call.1} parent=5 // pred_region
        %s198 = ssub.s32 %s17, 1
        %s199 = sand.u32 %s44, 1
        %s200 = scalar_lea.sflag [#allocation3], %s199
        %s201 = sand.u32 %s44, 1
        %s202 = smul.addr %s201, 128
        %s203 = scalar_lea.vmem [#allocation2], %s202
        // Predicated region
        $region33: #{tpu_custom_call.1} parent=31 // pred_check
          %p204 = pneg %p57
        $region34: #{tpu_custom_call.1} parent=31 // pred_check_branch
          %206 = sbr.rel (%p204) target = $region36
        $region35: #{tpu_custom_call.1} parent=31 // pred_region
          %207 = dma.done %s200, 2048
        $region36: #{tpu_custom_call.1} parent=31 // pred_fallthru
          _
        // Predicated region
        $region37: #{tpu_custom_call.1} parent=31 // pred_check
          %p208 = pneg %p78
        $region38: #{tpu_custom_call.1} parent=31 // pred_check_branch
          %210 = sbr.rel (%p208) target = $region40
        $region39: #{tpu_custom_call.1} parent=31 // pred_region
          %211 = dma.done [#allocation5], 16
        $region40: #{tpu_custom_call.1} parent=31 // pred_fallthru
          _
        // Predicated region
        $region41: #{tpu_custom_call.1} parent=31 // pred_check
          %p212 = pneg %p99
        $region42: #{tpu_custom_call.1} parent=31 // pred_check_branch
          %214 = sbr.rel (%p212) target = $region44
        $region43: #{tpu_custom_call.1} parent=31 // pred_region
          %215 = dma.done [#allocation8], 16
        $region44: #{tpu_custom_call.1} parent=31 // pred_fallthru
          _
        %216 = sfence
        %s217 = sand.u32 %s44, 1
        %s218 = scalar_lea.sflag [#allocation3], %s217
        %s219 = sand.u32 %s44, 1
        %s220 = smul.addr %s219, 128
        %s221 = scalar_lea.vmem [#allocation2], %s220
        %p222 = pneg %p57
        %p223 = pneg %p54
        %p224 = pneg %p78
        %p225 = pneg %p75
        %p226 = pneg %p99
        %p227 = pneg %p96
        %p228 = pneg %p127
        %p229 = pneg %p124
        %s230 = sand.u32 %s114, 1
        %s231 = scalar_lea.sflag [#allocation4], %s230
        %s232 = sand.u32 %s114, 1
        %s233 = smul.addr %s232, 128
        %s234 = scalar_lea.vmem [#allocation9], %s233
        %s235 = smul.u32 16, %s27
        %s236 = smul.u32 16, %s27
        %v237 = vld [vmem:[%s203] sm:$0xf]
        %v238 = vld [vmem:[%s203 + $0x4] sm:$0xf]
        %vm239 = vcmask 1043456
        %v240 = vsel %vm239, %v237, 0.0
        %v241 = vsel %vm239, %v238, 0.0
        %v242 = vadd.f32 %v240, %v241
        %243 = vadd.xlane.f32.xlu0 %v242
        %v244 = vpop.xlane.xlu0 %243
        %v245 = vrot.slane %v244, 4
        %v246 = vadd.f32 %v244, %v245
        %v247 = vrot.slane %v246, 2
        %v248 = vadd.f32 %v246, %v247
        %v249 = vrot.slane %v248, 1
        %v250 = vadd.f32 %v248, %v249
        %s251 = vtos %v250
        %v252 = vmul.f32 %v237, %v237
        %v253 = vmul.f32 %v238, %v238
        %v254 = vsel %vm239, %v252, 0.0
        %v255 = vsel %vm239, %v253, 0.0
        %v256 = vadd.f32 %v254, %v255
        %257 = vadd.xlane.f32.xlu0 %v256
        %v258 = vpop.xlane.xlu0 %257
        %v259 = vrot.slane %v258, 4
        %v260 = vadd.f32 %v258, %v259
        %v261 = vrot.slane %v260, 2
        %v262 = vadd.f32 %v260, %v261
        %v263 = vrot.slane %v262, 1
        %v264 = vadd.f32 %v262, %v263
        %s265 = vtos %v264
        %s266 = smul.f32 %s251, 0.0009765625
        %s267 = smul.f32 %s251, %s266
        %s268 = ssub.f32 %s265, %s267
        %s269 = smax.f32 %s268, 0.0
        %s270 = smul.f32 %s269, 0.0009775171
        %s271 = sadd.f32 %s270, 1e-05
        %v272 = vstv %s271
        %v273 = vrsqrt.pop %v272
        %s274 = vtos %v273
        %s275 = smul.u32 %s27, 32
        %s276 = sld [smem:[#allocation6 + %s275]]
        %s277 = smul.f32 %s274, %s276
        %s278 = sld [smem:[#allocation7 + %s275]]
        %s279 = smul.f32 %s266, %s277
        %s280 = ssub.f32 %s278, %s279
        %v281 = vstv %s277
        %v282 = vmul.f32 %v237, %v281
        %v283 = vstv %s280
        %v284 = vadd.f32 %v282, %v283
        %285 = vst [vmem:[%s234] sm:$0xf] %v284
        %s286 = sadd.s32 %s275, 1
        %s287 = sld [smem:[#allocation6 + %s286]]
        %s288 = smul.f32 %s274, %s287
        %s289 = sld [smem:[#allocation7 + %s286]]
        %s290 = smul.f32 %s266, %s288
        %s291 = ssub.f32 %s289, %s290
        %v292 = vstv %s288
        %v293 = vmul.f32 %v238, %v292
        %v294 = vstv %s291
        %v295 = vadd.f32 %v293, %v294
        %s296 = scalar_lea.vmem %s234, 4 [#allocation9]
        %297 = vst [vmem:[%s296] sm:$0xf] %v295
        %s298 = scalar_lea.vmem %s203, 8 [#allocation2]
        %v299 = vld [vmem:[%s298] sm:$0xf]
        %v300 = vld [vmem:[%s298 + $0x4] sm:$0xf]
        %v301 = vsel %vm239, %v299, 0.0
        %v302 = vsel %vm239, %v300, 0.0
        %v303 = vadd.f32 %v301, %v302
        %304 = vadd.xlane.f32.xlu0 %v303
        %v305 = vpop.xlane.xlu0 %304
        %v306 = vrot.slane %v305, 4
        %v307 = vadd.f32 %v305, %v306
        %v308 = vrot.slane %v307, 2
        %v309 = vadd.f32 %v307, %v308
        %v310 = vrot.slane %v309, 1
        %v311 = vadd.f32 %v309, %v310
        %s312 = vtos %v311
        %v313 = vmul.f32 %v299, %v299
        %v314 = vmul.f32 %v300, %v300
        %v315 = vsel %vm239, %v313, 0.0
        %v316 = vsel %vm239, %v314, 0.0
        %v317 = vadd.f32 %v315, %v316
        %318 = vadd.xlane.f32.xlu0 %v317
        %v319 = vpop.xlane.xlu0 %318
        %v320 = vrot.slane %v319, 4
        %v321 = vadd.f32 %v319, %v320
        %v322 = vrot.slane %v321, 2
        %v323 = vadd.f32 %v321, %v322
        %v324 = vrot.slane %v323, 1
        %v325 = vadd.f32 %v323, %v324
        %s326 = vtos %v325
        %s327 = smul.f32 %s312, 0.0009765625
        %s328 = smul.f32 %s312, %s327
        %s329 = ssub.f32 %s326, %s328
        %s330 = smax.f32 %s329, 0.0
        %s331 = smul.f32 %s330, 0.0009775171
        %s332 = sadd.f32 %s331, 1e-05
        %v333 = vstv %s332
        %v334 = vrsqrt.pop %v333
        %s335 = vtos %v334
        %s336 = smul.u32 %s27, 16
        %s337 = sadd.s32 %s336, 1
        %s338 = smul.u32 %s337, 2
        %s339 = sld [smem:[#allocation6 + %s338]]
        %s340 = smul.f32 %s335, %s339
        %s341 = sld [smem:[#allocation7 + %s338]]
        %s342 = smul.f32 %s327, %s340
        %s343 = ssub.f32 %s341, %s342
        %v344 = vstv %s340
        %v345 = vmul.f32 %v299, %v344
        %v346 = vstv %s343
        %v347 = vadd.f32 %v345, %v346
        %s348 = scalar_lea.vmem %s234, 8 [#allocation9]
        %349 = vst [vmem:[%s348] sm:$0xf] %v347
        %s350 = sadd.s32 %s338, 1
        %s351 = sld [smem:[#allocation6 + %s350]]
        %s352 = smul.f32 %s335, %s351
        %s353 = sld [smem:[#allocation7 + %s350]]
        %s354 = smul.f32 %s327, %s352
        %s355 = ssub.f32 %s353, %s354
        %v356 = vstv %s352
        %v357 = vmul.f32 %v300, %v356
        %v358 = vstv %s355
        %v359 = vadd.f32 %v357, %v358
        %s360 = scalar_lea.vmem %s234, 12 [#allocation9]
        %361 = vst [vmem:[%s360] sm:$0xf] %v359
        %s362 = scalar_lea.vmem %s203, 16 [#allocation2]
        %v363 = vld [vmem:[%s362] sm:$0xf]
        %v364 = vld [vmem:[%s362 + $0x4] sm:$0xf]
        %v365 = vsel %vm239, %v363, 0.0
        %v366 = vsel %vm239, %v364, 0.0
        %v367 = vadd.f32 %v365, %v366
        %368 = vadd.xlane.f32.xlu0 %v367
        %v369 = vpop.xlane.xlu0 %368
        %v370 = vrot.slane %v369, 4
        %v371 = vadd.f32 %v369, %v370
        %v372 = vrot.slane %v371, 2
        %v373 = vadd.f32 %v371, %v372
        %v374 = vrot.slane %v373, 1
        %v375 = vadd.f32 %v373, %v374
        %s376 = vtos %v375
        %v377 = vmul.f32 %v363, %v363
        %v378 = vmul.f32 %v364, %v364
        %v379 = vsel %vm239, %v377, 0.0
        %v380 = vsel %vm239, %v378, 0.0
        %v381 = vadd.f32 %v379, %v380
        %382 = vadd.xlane.f32.xlu0 %v381
        %v383 = vpop.xlane.xlu0 %382
        %v384 = vrot.slane %v383, 4
        %v385 = vadd.f32 %v383, %v384
        %v386 = vrot.slane %v385, 2
        %v387 = vadd.f32 %v385, %v386
        %v388 = vrot.slane %v387, 1
        %v389 = vadd.f32 %v387, %v388
        %s390 = vtos %v389
        %s391 = smul.f32 %s376, 0.0009765625
        %s392 = smul.f32 %s376, %s391
        %s393 = ssub.f32 %s390, %s392
        %s394 = smax.f32 %s393, 0.0
        %s395 = smul.f32 %s394, 0.0009775171
        %s396 = sadd.f32 %s395, 1e-05
        %v397 = vstv %s396
        %v398 = vrsqrt.pop %v397
        %s399 = vtos %v398
        %s400 = sadd.s32 %s336, 2
        %s401 = smul.u32 %s400, 2
        %s402 = sld [smem:[#allocation6 + %s401]]
        %s403 = smul.f32 %s399, %s402
        %s404 = sld [smem:[#allocation7 + %s401]]
        %s405 = smul.f32 %s391, %s403
        %s406 = ssub.f32 %s404, %s405
        %v407 = vstv %s403
        %v408 = vmul.f32 %v363, %v407
        %v409 = vstv %s406
        %v410 = vadd.f32 %v408, %v409
        %s411 = scalar_lea.vmem %s234, 16 [#allocation9]
        %412 = vst [vmem:[%s411] sm:$0xf] %v410
        %s413 = sadd.s32 %s401, 1
        %s414 = sld [smem:[#allocation6 + %s413]]
        %s415 = smul.f32 %s399, %s414
        %s416 = sld [smem:[#allocation7 + %s413]]
        %s417 = smul.f32 %s391, %s415
        %s418 = ssub.f32 %s416, %s417
        %v419 = vstv %s415
        %v420 = vmul.f32 %v364, %v419
        %v421 = vstv %s418
        %v422 = vadd.f32 %v420, %v421
        %s423 = scalar_lea.vmem %s234, 20 [#allocation9]
        %424 = vst [vmem:[%s423] sm:$0xf] %v422
        %s425 = scalar_lea.vmem %s203, 24 [#allocation2]
        %v426 = vld [vmem:[%s425] sm:$0xf]
        %v427 = vld [vmem:[%s425 + $0x4] sm:$0xf]
        %v428 = vsel %vm239, %v426, 0.0
        %v429 = vsel %vm239, %v427, 0.0
        %v430 = vadd.f32 %v428, %v429
        %431 = vadd.xlane.f32.xlu0 %v430
        %v432 = vpop.xlane.xlu0 %431
        %v433 = vrot.slane %v432, 4
        %v434 = vadd.f32 %v432, %v433
        %v435 = vrot.slane %v434, 2
        %v436 = vadd.f32 %v434, %v435
        %v437 = vrot.slane %v436, 1
        %v438 = vadd.f32 %v436, %v437
        %s439 = vtos %v438
        %v440 = vmul.f32 %v426, %v426
        %v441 = vmul.f32 %v427, %v427
        %v442 = vsel %vm239, %v440, 0.0
        %v443 = vsel %vm239, %v441, 0.0
        %v444 = vadd.f32 %v442, %v443
        %445 = vadd.xlane.f32.xlu0 %v444
        %v446 = vpop.xlane.xlu0 %445
        %v447 = vrot.slane %v446, 4
        %v448 = vadd.f32 %v446, %v447
        %v449 = vrot.slane %v448, 2
        %v450 = vadd.f32 %v448, %v449
        %v451 = vrot.slane %v450, 1
        %v452 = vadd.f32 %v450, %v451
        %s453 = vtos %v452
        %s454 = smul.f32 %s439, 0.0009765625
        %s455 = smul.f32 %s439, %s454
        %s456 = ssub.f32 %s453, %s455
        %s457 = smax.f32 %s456, 0.0
        %s458 = smul.f32 %s457, 0.0009775171
        %s459 = sadd.f32 %s458, 1e-05
        %v460 = vstv %s459
        %v461 = vrsqrt.pop %v460
        %s462 = vtos %v461
        %s463 = sadd.s32 %s336, 3
        %s464 = smul.u32 %s463, 2
        %s465 = sld [smem:[#allocation6 + %s464]]
        %s466 = smul.f32 %s462, %s465
        %s467 = sld [smem:[#allocation7 + %s464]]
        %s468 = smul.f32 %s454, %s466
        %s469 = ssub.f32 %s467, %s468
        %v470 = vstv %s466
        %v471 = vmul.f32 %v426, %v470
        %v472 = vstv %s469
        %v473 = vadd.f32 %v471, %v472
        %s474 = scalar_lea.vmem %s234, 24 [#allocation9]
        %475 = vst [vmem:[%s474] sm:$0xf] %v473
        %s476 = sadd.s32 %s464, 1
        %s477 = sld [smem:[#allocation6 + %s476]]
        %s478 = smul.f32 %s462, %s477
        %s479 = sld [smem:[#allocation7 + %s476]]
        %s480 = smul.f32 %s454, %s478
        %s481 = ssub.f32 %s479, %s480
        %v482 = vstv %s478
        %v483 = vmul.f32 %v427, %v482
        %v484 = vstv %s481
        %v485 = vadd.f32 %v483, %v484
        %s486 = scalar_lea.vmem %s234, 28 [#allocation9]
        %487 = vst [vmem:[%s486] sm:$0xf] %v485
        %s488 = scalar_lea.vmem %s203, 32 [#allocation2]
        %v489 = vld [vmem:[%s488] sm:$0xf]
        %v490 = vld [vmem:[%s488 + $0x4] sm:$0xf]
        %v491 = vsel %vm239, %v489, 0.0
        %v492 = vsel %vm239, %v490, 0.0
        %v493 = vadd.f32 %v491, %v492
        %494 = vadd.xlane.f32.xlu0 %v493
        %v495 = vpop.xlane.xlu0 %494
        %v496 = vrot.slane %v495, 4
        %v497 = vadd.f32 %v495, %v496
        %v498 = vrot.slane %v497, 2
        %v499 = vadd.f32 %v497, %v498
        %v500 = vrot.slane %v499, 1
        %v501 = vadd.f32 %v499, %v500
        %s502 = vtos %v501
        %v503 = vmul.f32 %v489, %v489
        %v504 = vmul.f32 %v490, %v490
        %v505 = vsel %vm239, %v503, 0.0
        %v506 = vsel %vm239, %v504, 0.0
        %v507 = vadd.f32 %v505, %v506
        %508 = vadd.xlane.f32.xlu0 %v507
        %v509 = vpop.xlane.xlu0 %508
        %v510 = vrot.slane %v509, 4
        %v511 = vadd.f32 %v509, %v510
        %v512 = vrot.slane %v511, 2
        %v513 = vadd.f32 %v511, %v512
        %v514 = vrot.slane %v513, 1
        %v515 = vadd.f32 %v513, %v514
        %s516 = vtos %v515
        %s517 = smul.f32 %s502, 0.0009765625
        %s518 = smul.f32 %s502, %s517
        %s519 = ssub.f32 %s516, %s518
        %s520 = smax.f32 %s519, 0.0
        %s521 = smul.f32 %s520, 0.0009775171
        %s522 = sadd.f32 %s521, 1e-05
        %v523 = vstv %s522
        %v524 = vrsqrt.pop %v523
        %s525 = vtos %v524
        %s526 = sadd.s32 %s336, 4
        %s527 = smul.u32 %s526, 2
        %s528 = sld [smem:[#allocation6 + %s527]]
        %s529 = smul.f32 %s525, %s528
        %s530 = sld [smem:[#allocation7 + %s527]]
        %s531 = smul.f32 %s517, %s529
        %s532 = ssub.f32 %s530, %s531
        %v533 = vstv %s529
        %v534 = vmul.f32 %v489, %v533
        %v535 = vstv %s532
        %v536 = vadd.f32 %v534, %v535
        %s537 = scalar_lea.vmem %s234, 32 [#allocation9]
        %538 = vst [vmem:[%s537] sm:$0xf] %v536
        %s539 = sadd.s32 %s527, 1
        %s540 = sld [smem:[#allocation6 + %s539]]
        %s541 = smul.f32 %s525, %s540
        %s542 = sld [smem:[#allocation7 + %s539]]
        %s543 = smul.f32 %s517, %s541
        %s544 = ssub.f32 %s542, %s543
        %v545 = vstv %s541
        %v546 = vmul.f32 %v490, %v545
        %v547 = vstv %s544
        %v548 = vadd.f32 %v546, %v547
        %s549 = scalar_lea.vmem %s234, 36 [#allocation9]
        %550 = vst [vmem:[%s549] sm:$0xf] %v548
        %s551 = scalar_lea.vmem %s203, 40 [#allocation2]
        %v552 = vld [vmem:[%s551] sm:$0xf]
        %v553 = vld [vmem:[%s551 + $0x4] sm:$0xf]
        %v554 = vsel %vm239, %v552, 0.0
        %v555 = vsel %vm239, %v553, 0.0
        %v556 = vadd.f32 %v554, %v555
        %557 = vadd.xlane.f32.xlu0 %v556
        %v558 = vpop.xlane.xlu0 %557
        %v559 = vrot.slane %v558, 4
        %v560 = vadd.f32 %v558, %v559
        %v561 = vrot.slane %v560, 2
        %v562 = vadd.f32 %v560, %v561
        %v563 = vrot.slane %v562, 1
        %v564 = vadd.f32 %v562, %v563
        %s565 = vtos %v564
        %v566 = vmul.f32 %v552, %v552
        %v567 = vmul.f32 %v553, %v553
        %v568 = vsel %vm239, %v566, 0.0
        %v569 = vsel %vm239, %v567, 0.0
        %v570 = vadd.f32 %v568, %v569
        %571 = vadd.xlane.f32.xlu0 %v570
        %v572 = vpop.xlane.xlu0 %571
        %v573 = vrot.slane %v572, 4
        %v574 = vadd.f32 %v572, %v573
        %v575 = vrot.slane %v574, 2
        %v576 = vadd.f32 %v574, %v575
        %v577 = vrot.slane %v576, 1
        %v578 = vadd.f32 %v576, %v577
        %s579 = vtos %v578
        %s580 = smul.f32 %s565, 0.0009765625
        %s581 = smul.f32 %s565, %s580
        %s582 = ssub.f32 %s579, %s581
        %s583 = smax.f32 %s582, 0.0
        %s584 = smul.f32 %s583, 0.0009775171
        %s585 = sadd.f32 %s584, 1e-05
        %v586 = vstv %s585
        %v587 = vrsqrt.pop %v586
        %s588 = vtos %v587
        %s589 = sadd.s32 %s336, 5
        %s590 = smul.u32 %s589, 2
        %s591 = sld [smem:[#allocation6 + %s590]]
        %s592 = smul.f32 %s588, %s591
        %s593 = sld [smem:[#allocation7 + %s590]]
        %s594 = smul.f32 %s580, %s592
        %s595 = ssub.f32 %s593, %s594
        %v596 = vstv %s592
        %v597 = vmul.f32 %v552, %v596
        %v598 = vstv %s595
        %v599 = vadd.f32 %v597, %v598
        %s600 = scalar_lea.vmem %s234, 40 [#allocation9]
        %601 = vst [vmem:[%s600] sm:$0xf] %v599
        %s602 = sadd.s32 %s590, 1
        %s603 = sld [smem:[#allocation6 + %s602]]
        %s604 = smul.f32 %s588, %s603
        %s605 = sld [smem:[#allocation7 + %s602]]
        %s606 = smul.f32 %s580, %s604
        %s607 = ssub.f32 %s605, %s606
        %v608 = vstv %s604
        %v609 = vmul.f32 %v553, %v608
        %v610 = vstv %s607
        %v611 = vadd.f32 %v609, %v610
        %s612 = scalar_lea.vmem %s234, 44 [#allocation9]
        %613 = vst [vmem:[%s612] sm:$0xf] %v611
        %s614 = scalar_lea.vmem %s203, 48 [#allocation2]
        %v615 = vld [vmem:[%s614] sm:$0xf]
        %v616 = vld [vmem:[%s614 + $0x4] sm:$0xf]
        %v617 = vsel %vm239, %v615, 0.0
        %v618 = vsel %vm239, %v616, 0.0
        %v619 = vadd.f32 %v617, %v618
        %620 = vadd.xlane.f32.xlu0 %v619
        %v621 = vpop.xlane.xlu0 %620
        %v622 = vrot.slane %v621, 4
        %v623 = vadd.f32 %v621, %v622
        %v624 = vrot.slane %v623, 2
        %v625 = vadd.f32 %v623, %v624
        %v626 = vrot.slane %v625, 1
        %v627 = vadd.f32 %v625, %v626
        %s628 = vtos %v627
        %v629 = vmul.f32 %v615, %v615
        %v630 = vmul.f32 %v616, %v616
        %v631 = vsel %vm239, %v629, 0.0
        %v632 = vsel %vm239, %v630, 0.0
        %v633 = vadd.f32 %v631, %v632
        %634 = vadd.xlane.f32.xlu0 %v633
        %v635 = vpop.xlane.xlu0 %634
        %v636 = vrot.slane %v635, 4
        %v637 = vadd.f32 %v635, %v636
        %v638 = vrot.slane %v637, 2
        %v639 = vadd.f32 %v637, %v638
        %v640 = vrot.slane %v639, 1
        %v641 = vadd.f32 %v639, %v640
        %s642 = vtos %v641
        %s643 = smul.f32 %s628, 0.0009765625
        %s644 = smul.f32 %s628, %s643
        %s645 = ssub.f32 %s642, %s644
        %s646 = smax.f32 %s645, 0.0
        %s647 = smul.f32 %s646, 0.0009775171
        %s648 = sadd.f32 %s647, 1e-05
        %v649 = vstv %s648
        %v650 = vrsqrt.pop %v649
        %s651 = vtos %v650
        %s652 = sadd.s32 %s336, 6
        %s653 = smul.u32 %s652, 2
        %s654 = sld [smem:[#allocation6 + %s653]]
        %s655 = smul.f32 %s651, %s654
        %s656 = sld [smem:[#allocation7 + %s653]]
        %s657 = smul.f32 %s643, %s655
        %s658 = ssub.f32 %s656, %s657
        %v659 = vstv %s655
        %v660 = vmul.f32 %v615, %v659
        %v661 = vstv %s658
        %v662 = vadd.f32 %v660, %v661
        %s663 = scalar_lea.vmem %s234, 48 [#allocation9]
        %664 = vst [vmem:[%s663] sm:$0xf] %v662
        %s665 = sadd.s32 %s653, 1
        %s666 = sld [smem:[#allocation6 + %s665]]
        %s667 = smul.f32 %s651, %s666
        %s668 = sld [smem:[#allocation7 + %s665]]
        %s669 = smul.f32 %s643, %s667
        %s670 = ssub.f32 %s668, %s669
        %v671 = vstv %s667
        %v672 = vmul.f32 %v616, %v671
        %v673 = vstv %s670
        %v674 = vadd.f32 %v672, %v673
        %s675 = scalar_lea.vmem %s234, 52 [#allocation9]
        %676 = vst [vmem:[%s675] sm:$0xf] %v674
        %s677 = scalar_lea.vmem %s203, 56 [#allocation2]
        %v678 = vld [vmem:[%s677] sm:$0xf]
        %v679 = vld [vmem:[%s677 + $0x4] sm:$0xf]
        %v680 = vsel %vm239, %v678, 0.0
        %v681 = vsel %vm239, %v679, 0.0
        %v682 = vadd.f32 %v680, %v681
        %683 = vadd.xlane.f32.xlu0 %v682
        %v684 = vpop.xlane.xlu0 %683
        %v685 = vrot.slane %v684, 4
        %v686 = vadd.f32 %v684, %v685
        %v687 = vrot.slane %v686, 2
        %v688 = vadd.f32 %v686, %v687
        %v689 = vrot.slane %v688, 1
        %v690 = vadd.f32 %v688, %v689
        %s691 = vtos %v690
        %v692 = vmul.f32 %v678, %v678
        %v693 = vmul.f32 %v679, %v679
        %v694 = vsel %vm239, %v692, 0.0
        %v695 = vsel %vm239, %v693, 0.0
        %v696 = vadd.f32 %v694, %v695
        %697 = vadd.xlane.f32.xlu0 %v696
        %v698 = vpop.xlane.xlu0 %697
        %v699 = vrot.slane %v698, 4
        %v700 = vadd.f32 %v698, %v699
        %v701 = vrot.slane %v700, 2
        %v702 = vadd.f32 %v700, %v701
        %v703 = vrot.slane %v702, 1
        %v704 = vadd.f32 %v702, %v703
        %s705 = vtos %v704
        %s706 = smul.f32 %s691, 0.0009765625
        %s707 = smul.f32 %s691, %s706
        %s708 = ssub.f32 %s705, %s707
        %s709 = smax.f32 %s708, 0.0
        %s710 = smul.f32 %s709, 0.0009775171
        %s711 = sadd.f32 %s710, 1e-05
        %v712 = vstv %s711
        %v713 = vrsqrt.pop %v712
        %s714 = vtos %v713
        %s715 = sadd.s32 %s336, 7
        %s716 = smul.u32 %s715, 2
        %s717 = sld [smem:[#allocation6 + %s716]]
        %s718 = smul.f32 %s714, %s717
        %s719 = sld [smem:[#allocation7 + %s716]]
        %s720 = smul.f32 %s706, %s718
        %s721 = ssub.f32 %s719, %s720
        %v722 = vstv %s718
        %v723 = vmul.f32 %v678, %v722
        %v724 = vstv %s721
        %v725 = vadd.f32 %v723, %v724
        %s726 = scalar_lea.vmem %s234, 56 [#allocation9]
        %727 = vst [vmem:[%s726] sm:$0xf] %v725
        %s728 = sadd.s32 %s716, 1
        %s729 = sld [smem:[#allocation6 + %s728]]
        %s730 = smul.f32 %s714, %s729
        %s731 = sld [smem:[#allocation7 + %s728]]
        %s732 = smul.f32 %s706, %s730
        %s733 = ssub.f32 %s731, %s732
        %v734 = vstv %s730
        %v735 = vmul.f32 %v679, %v734
        %v736 = vstv %s733
        %v737 = vadd.f32 %v735, %v736
        %s738 = scalar_lea.vmem %s234, 60 [#allocation9]
        %739 = vst [vmem:[%s738] sm:$0xf] %v737
        %s740 = scalar_lea.vmem %s203, 64 [#allocation2]
        %v741 = vld [vmem:[%s740] sm:$0xf]
        %v742 = vld [vmem:[%s740 + $0x4] sm:$0xf]
        %v743 = vsel %vm239, %v741, 0.0
        %v744 = vsel %vm239, %v742, 0.0
        %v745 = vadd.f32 %v743, %v744
        %746 = vadd.xlane.f32.xlu0 %v745
        %v747 = vpop.xlane.xlu0 %746
        %v748 = vrot.slane %v747, 4
        %v749 = vadd.f32 %v747, %v748
        %v750 = vrot.slane %v749, 2
        %v751 = vadd.f32 %v749, %v750
        %v752 = vrot.slane %v751, 1
        %v753 = vadd.f32 %v751, %v752
        %s754 = vtos %v753
        %v755 = vmul.f32 %v741, %v741
        %v756 = vmul.f32 %v742, %v742
        %v757 = vsel %vm239, %v755, 0.0
        %v758 = vsel %vm239, %v756, 0.0
        %v759 = vadd.f32 %v757, %v758
        %760 = vadd.xlane.f32.xlu0 %v759
        %v761 = vpop.xlane.xlu0 %760
        %v762 = vrot.slane %v761, 4
        %v763 = vadd.f32 %v761, %v762
        %v764 = vrot.slane %v763, 2
        %v765 = vadd.f32 %v763, %v764
        %v766 = vrot.slane %v765, 1
        %v767 = vadd.f32 %v765, %v766
        %s768 = vtos %v767
        %s769 = smul.f32 %s754, 0.0009765625
        %s770 = smul.f32 %s754, %s769
        %s771 = ssub.f32 %s768, %s770
        %s772 = smax.f32 %s771, 0.0
        %s773 = smul.f32 %s772, 0.0009775171
        %s774 = sadd.f32 %s773, 1e-05
        %v775 = vstv %s774
        %v776 = vrsqrt.pop %v775
        %s777 = vtos %v776
        %s778 = sadd.s32 %s336, 8
        %s779 = smul.u32 %s778, 2
        %s780 = sld [smem:[#allocation6 + %s779]]
        %s781 = smul.f32 %s777, %s780
        %s782 = sld [smem:[#allocation7 + %s779]]
        %s783 = smul.f32 %s769, %s781
        %s784 = ssub.f32 %s782, %s783
        %v785 = vstv %s781
        %v786 = vmul.f32 %v741, %v785
        %v787 = vstv %s784
        %v788 = vadd.f32 %v786, %v787
        %s789 = scalar_lea.vmem %s234, 64 [#allocation9]
        %790 = vst [vmem:[%s789] sm:$0xf] %v788
        %s791 = sadd.s32 %s779, 1
        %s792 = sld [smem:[#allocation6 + %s791]]
        %s793 = smul.f32 %s777, %s792
        %s794 = sld [smem:[#allocation7 + %s791]]
        %s795 = smul.f32 %s769, %s793
        %s796 = ssub.f32 %s794, %s795
        %v797 = vstv %s793
        %v798 = vmul.f32 %v742, %v797
        %v799 = vstv %s796
        %v800 = vadd.f32 %v798, %v799
        %s801 = scalar_lea.vmem %s234, 68 [#allocation9]
        %802 = vst [vmem:[%s801] sm:$0xf] %v800
        %s803 = scalar_lea.vmem %s203, 72 [#allocation2]
        %v804 = vld [vmem:[%s803] sm:$0xf]
        %v805 = vld [vmem:[%s803 + $0x4] sm:$0xf]
        %v806 = vsel %vm239, %v804, 0.0
        %v807 = vsel %vm239, %v805, 0.0
        %v808 = vadd.f32 %v806, %v807
        %809 = vadd.xlane.f32.xlu0 %v808
        %v810 = vpop.xlane.xlu0 %809
        %v811 = vrot.slane %v810, 4
        %v812 = vadd.f32 %v810, %v811
        %v813 = vrot.slane %v812, 2
        %v814 = vadd.f32 %v812, %v813
        %v815 = vrot.slane %v814, 1
        %v816 = vadd.f32 %v814, %v815
        %s817 = vtos %v816
        %v818 = vmul.f32 %v804, %v804
        %v819 = vmul.f32 %v805, %v805
        %v820 = vsel %vm239, %v818, 0.0
        %v821 = vsel %vm239, %v819, 0.0
        %v822 = vadd.f32 %v820, %v821
        %823 = vadd.xlane.f32.xlu0 %v822
        %v824 = vpop.xlane.xlu0 %823
        %v825 = vrot.slane %v824, 4
        %v826 = vadd.f32 %v824, %v825
        %v827 = vrot.slane %v826, 2
        %v828 = vadd.f32 %v826, %v827
        %v829 = vrot.slane %v828, 1
        %v830 = vadd.f32 %v828, %v829
        %s831 = vtos %v830
        %s832 = smul.f32 %s817, 0.0009765625
        %s833 = smul.f32 %s817, %s832
        %s834 = ssub.f32 %s831, %s833
        %s835 = smax.f32 %s834, 0.0
        %s836 = smul.f32 %s835, 0.0009775171
        %s837 = sadd.f32 %s836, 1e-05
        %v838 = vstv %s837
        %v839 = vrsqrt.pop %v838
        %s840 = vtos %v839
        %s841 = sadd.s32 %s336, 9
        %s842 = smul.u32 %s841, 2
        %s843 = sld [smem:[#allocation6 + %s842]]
        %s844 = smul.f32 %s840, %s843
        %s845 = sld [smem:[#allocation7 + %s842]]
        %s846 = smul.f32 %s832, %s844
        %s847 = ssub.f32 %s845, %s846
        %v848 = vstv %s844
        %v849 = vmul.f32 %v804, %v848
        %v850 = vstv %s847
        %v851 = vadd.f32 %v849, %v850
        %s852 = scalar_lea.vmem %s234, 72 [#allocation9]
        %853 = vst [vmem:[%s852] sm:$0xf] %v851
        %s854 = sadd.s32 %s842, 1
        %s855 = sld [smem:[#allocation6 + %s854]]
        %s856 = smul.f32 %s840, %s855
        %s857 = sld [smem:[#allocation7 + %s854]]
        %s858 = smul.f32 %s832, %s856
        %s859 = ssub.f32 %s857, %s858
        %v860 = vstv %s856
        %v861 = vmul.f32 %v805, %v860
        %v862 = vstv %s859
        %v863 = vadd.f32 %v861, %v862
        %s864 = scalar_lea.vmem %s234, 76 [#allocation9]
        %865 = vst [vmem:[%s864] sm:$0xf] %v863
        %s866 = scalar_lea.vmem %s203, 80 [#allocation2]
        %v867 = vld [vmem:[%s866] sm:$0xf]
        %v868 = vld [vmem:[%s866 + $0x4] sm:$0xf]
        %v869 = vsel %vm239, %v867, 0.0
        %v870 = vsel %vm239, %v868, 0.0
        %v871 = vadd.f32 %v869, %v870
        %872 = vadd.xlane.f32.xlu0 %v871
        %v873 = vpop.xlane.xlu0 %872
        %v874 = vrot.slane %v873, 4
        %v875 = vadd.f32 %v873, %v874
        %v876 = vrot.slane %v875, 2
        %v877 = vadd.f32 %v875, %v876
        %v878 = vrot.slane %v877, 1
        %v879 = vadd.f32 %v877, %v878
        %s880 = vtos %v879
        %v881 = vmul.f32 %v867, %v867
        %v882 = vmul.f32 %v868, %v868
        %v883 = vsel %vm239, %v881, 0.0
        %v884 = vsel %vm239, %v882, 0.0
        %v885 = vadd.f32 %v883, %v884
        %886 = vadd.xlane.f32.xlu0 %v885
        %v887 = vpop.xlane.xlu0 %886
        %v888 = vrot.slane %v887, 4
        %v889 = vadd.f32 %v887, %v888
        %v890 = vrot.slane %v889, 2
        %v891 = vadd.f32 %v889, %v890
        %v892 = vrot.slane %v891, 1
        %v893 = vadd.f32 %v891, %v892
        %s894 = vtos %v893
        %s895 = smul.f32 %s880, 0.0009765625
        %s896 = smul.f32 %s880, %s895
        %s897 = ssub.f32 %s894, %s896
        %s898 = smax.f32 %s897, 0.0
        %s899 = smul.f32 %s898, 0.0009775171
        %s900 = sadd.f32 %s899, 1e-05
        %v901 = vstv %s900
        %v902 = vrsqrt.pop %v901
        %s903 = vtos %v902
        %s904 = sadd.s32 %s336, 10
        %s905 = smul.u32 %s904, 2
        %s906 = sld [smem:[#allocation6 + %s905]]
        %s907 = smul.f32 %s903, %s906
        %s908 = sld [smem:[#allocation7 + %s905]]
        %s909 = smul.f32 %s895, %s907
        %s910 = ssub.f32 %s908, %s909
        %v911 = vstv %s907
        %v912 = vmul.f32 %v867, %v911
        %v913 = vstv %s910
        %v914 = vadd.f32 %v912, %v913
        %s915 = scalar_lea.vmem %s234, 80 [#allocation9]
        %916 = vst [vmem:[%s915] sm:$0xf] %v914
        %s917 = sadd.s32 %s905, 1
        %s918 = sld [smem:[#allocation6 + %s917]]
        %s919 = smul.f32 %s903, %s918
        %s920 = sld [smem:[#allocation7 + %s917]]
        %s921 = smul.f32 %s895, %s919
        %s922 = ssub.f32 %s920, %s921
        %v923 = vstv %s919
        %v924 = vmul.f32 %v868, %v923
        %v925 = vstv %s922
        %v926 = vadd.f32 %v924, %v925
        %s927 = scalar_lea.vmem %s234, 84 [#allocation9]
        %928 = vst [vmem:[%s927] sm:$0xf] %v926
        %s929 = scalar_lea.vmem %s203, 88 [#allocation2]
        %v930 = vld [vmem:[%s929] sm:$0xf]
        %v931 = vld [vmem:[%s929 + $0x4] sm:$0xf]
        %v932 = vsel %vm239, %v930, 0.0
        %v933 = vsel %vm239, %v931, 0.0
        %v934 = vadd.f32 %v932, %v933
        %935 = vadd.xlane.f32.xlu0 %v934
        %v936 = vpop.xlane.xlu0 %935
        %v937 = vrot.slane %v936, 4
        %v938 = vadd.f32 %v936, %v937
        %v939 = vrot.slane %v938, 2
        %v940 = vadd.f32 %v938, %v939
        %v941 = vrot.slane %v940, 1
        %v942 = vadd.f32 %v940, %v941
        %s943 = vtos %v942
        %v944 = vmul.f32 %v930, %v930
        %v945 = vmul.f32 %v931, %v931
        %v946 = vsel %vm239, %v944, 0.0
        %v947 = vsel %vm239, %v945, 0.0
        %v948 = vadd.f32 %v946, %v947
        %949 = vadd.xlane.f32.xlu0 %v948
        %v950 = vpop.xlane.xlu0 %949
        %v951 = vrot.slane %v950, 4
        %v952 = vadd.f32 %v950, %v951
        %v953 = vrot.slane %v952, 2
        %v954 = vadd.f32 %v952, %v953
        %v955 = vrot.slane %v954, 1
        %v956 = vadd.f32 %v954, %v955
        %s957 = vtos %v956
        %s958 = smul.f32 %s943, 0.0009765625
        %s959 = smul.f32 %s943, %s958
        %s960 = ssub.f32 %s957, %s959
        %s961 = smax.f32 %s960, 0.0
        %s962 = smul.f32 %s961, 0.0009775171
        %s963 = sadd.f32 %s962, 1e-05
        %v964 = vstv %s963
        %v965 = vrsqrt.pop %v964
        %s966 = vtos %v965
        %s967 = sadd.s32 %s336, 11
        %s968 = smul.u32 %s967, 2
        %s969 = sld [smem:[#allocation6 + %s968]]
        %s970 = smul.f32 %s966, %s969
        %s971 = sld [smem:[#allocation7 + %s968]]
        %s972 = smul.f32 %s958, %s970
        %s973 = ssub.f32 %s971, %s972
        %v974 = vstv %s970
        %v975 = vmul.f32 %v930, %v974
        %v976 = vstv %s973
        %v977 = vadd.f32 %v975, %v976
        %s978 = scalar_lea.vmem %s234, 88 [#allocation9]
        %979 = vst [vmem:[%s978] sm:$0xf] %v977
        %s980 = sadd.s32 %s968, 1
        %s981 = sld [smem:[#allocation6 + %s980]]
        %s982 = smul.f32 %s966, %s981
        %s983 = sld [smem:[#allocation7 + %s980]]
        %s984 = smul.f32 %s958, %s982
        %s985 = ssub.f32 %s983, %s984
        %v986 = vstv %s982
        %v987 = vmul.f32 %v931, %v986
        %v988 = vstv %s985
        %v989 = vadd.f32 %v987, %v988
        %s990 = scalar_lea.vmem %s234, 92 [#allocation9]
        %991 = vst [vmem:[%s990] sm:$0xf] %v989
        %s992 = scalar_lea.vmem %s203, 96 [#allocation2]
        %v993 = vld [vmem:[%s992] sm:$0xf]
        %v994 = vld [vmem:[%s992 + $0x4] sm:$0xf]
        %v995 = vsel %vm239, %v993, 0.0
        %v996 = vsel %vm239, %v994, 0.0
        %v997 = vadd.f32 %v995, %v996
        %998 = vadd.xlane.f32.xlu0 %v997
        %v999 = vpop.xlane.xlu0 %998
        %v1000 = vrot.slane %v999, 4
        %v1001 = vadd.f32 %v999, %v1000
        %v1002 = vrot.slane %v1001, 2
        %v1003 = vadd.f32 %v1001, %v1002
        %v1004 = vrot.slane %v1003, 1
        %v1005 = vadd.f32 %v1003, %v1004
        %s1006 = vtos %v1005
        %v1007 = vmul.f32 %v993, %v993
        %v1008 = vmul.f32 %v994, %v994
        %v1009 = vsel %vm239, %v1007, 0.0
        %v1010 = vsel %vm239, %v1008, 0.0
        %v1011 = vadd.f32 %v1009, %v1010
        %1012 = vadd.xlane.f32.xlu0 %v1011
        %v1013 = vpop.xlane.xlu0 %1012
        %v1014 = vrot.slane %v1013, 4
        %v1015 = vadd.f32 %v1013, %v1014
        %v1016 = vrot.slane %v1015, 2
        %v1017 = vadd.f32 %v1015, %v1016
        %v1018 = vrot.slane %v1017, 1
        %v1019 = vadd.f32 %v1017, %v1018
        %s1020 = vtos %v1019
        %s1021 = smul.f32 %s1006, 0.0009765625
        %s1022 = smul.f32 %s1006, %s1021
        %s1023 = ssub.f32 %s1020, %s1022
        %s1024 = smax.f32 %s1023, 0.0
        %s1025 = smul.f32 %s1024, 0.0009775171
        %s1026 = sadd.f32 %s1025, 1e-05
        %v1027 = vstv %s1026
        %v1028 = vrsqrt.pop %v1027
        %s1029 = vtos %v1028
        %s1030 = sadd.s32 %s336, 12
        %s1031 = smul.u32 %s1030, 2
        %s1032 = sld [smem:[#allocation6 + %s1031]]
        %s1033 = smul.f32 %s1029, %s1032
        %s1034 = sld [smem:[#allocation7 + %s1031]]
        %s1035 = smul.f32 %s1021, %s1033
        %s1036 = ssub.f32 %s1034, %s1035
        %v1037 = vstv %s1033
        %v1038 = vmul.f32 %v993, %v1037
        %v1039 = vstv %s1036
        %v1040 = vadd.f32 %v1038, %v1039
        %s1041 = scalar_lea.vmem %s234, 96 [#allocation9]
        %1042 = vst [vmem:[%s1041] sm:$0xf] %v1040
        %s1043 = sadd.s32 %s1031, 1
        %s1044 = sld [smem:[#allocation6 + %s1043]]
        %s1045 = smul.f32 %s1029, %s1044
        %s1046 = sld [smem:[#allocation7 + %s1043]]
        %s1047 = smul.f32 %s1021, %s1045
        %s1048 = ssub.f32 %s1046, %s1047
        %v1049 = vstv %s1045
        %v1050 = vmul.f32 %v994, %v1049
        %v1051 = vstv %s1048
        %v1052 = vadd.f32 %v1050, %v1051
        %s1053 = scalar_lea.vmem %s234, 100 [#allocation9]
        %1054 = vst [vmem:[%s1053] sm:$0xf] %v1052
        %s1055 = scalar_lea.vmem %s203, 104 [#allocation2]
        %v1056 = vld [vmem:[%s1055] sm:$0xf]
        %v1057 = vld [vmem:[%s1055 + $0x4] sm:$0xf]
        %v1058 = vsel %vm239, %v1056, 0.0
        %v1059 = vsel %vm239, %v1057, 0.0
        %v1060 = vadd.f32 %v1058, %v1059
        %1061 = vadd.xlane.f32.xlu0 %v1060
        %v1062 = vpop.xlane.xlu0 %1061
        %v1063 = vrot.slane %v1062, 4
        %v1064 = vadd.f32 %v1062, %v1063
        %v1065 = vrot.slane %v1064, 2
        %v1066 = vadd.f32 %v1064, %v1065
        %v1067 = vrot.slane %v1066, 1
        %v1068 = vadd.f32 %v1066, %v1067
        %s1069 = vtos %v1068
        %v1070 = vmul.f32 %v1056, %v1056
        %v1071 = vmul.f32 %v1057, %v1057
        %v1072 = vsel %vm239, %v1070, 0.0
        %v1073 = vsel %vm239, %v1071, 0.0
        %v1074 = vadd.f32 %v1072, %v1073
        %1075 = vadd.xlane.f32.xlu0 %v1074
        %v1076 = vpop.xlane.xlu0 %1075
        %v1077 = vrot.slane %v1076, 4
        %v1078 = vadd.f32 %v1076, %v1077
        %v1079 = vrot.slane %v1078, 2
        %v1080 = vadd.f32 %v1078, %v1079
        %v1081 = vrot.slane %v1080, 1
        %v1082 = vadd.f32 %v1080, %v1081
        %s1083 = vtos %v1082
        %s1084 = smul.f32 %s1069, 0.0009765625
        %s1085 = smul.f32 %s1069, %s1084
        %s1086 = ssub.f32 %s1083, %s1085
        %s1087 = smax.f32 %s1086, 0.0
        %s1088 = smul.f32 %s1087, 0.0009775171
        %s1089 = sadd.f32 %s1088, 1e-05
        %v1090 = vstv %s1089
        %v1091 = vrsqrt.pop %v1090
        %s1092 = vtos %v1091
        %s1093 = sadd.s32 %s336, 13
        %s1094 = smul.u32 %s1093, 2
        %s1095 = sld [smem:[#allocation6 + %s1094]]
        %s1096 = smul.f32 %s1092, %s1095
        %s1097 = sld [smem:[#allocation7 + %s1094]]
        %s1098 = smul.f32 %s1084, %s1096
        %s1099 = ssub.f32 %s1097, %s1098
        %v1100 = vstv %s1096
        %v1101 = vmul.f32 %v1056, %v1100
        %v1102 = vstv %s1099
        %v1103 = vadd.f32 %v1101, %v1102
        %s1104 = scalar_lea.vmem %s234, 104 [#allocation9]
        %1105 = vst [vmem:[%s1104] sm:$0xf] %v1103
        %s1106 = sadd.s32 %s1094, 1
        %s1107 = sld [smem:[#allocation6 + %s1106]]
        %s1108 = smul.f32 %s1092, %s1107
        %s1109 = sld [smem:[#allocation7 + %s1106]]
        %s1110 = smul.f32 %s1084, %s1108
        %s1111 = ssub.f32 %s1109, %s1110
        %v1112 = vstv %s1108
        %v1113 = vmul.f32 %v1057, %v1112
        %v1114 = vstv %s1111
        %v1115 = vadd.f32 %v1113, %v1114
        %s1116 = scalar_lea.vmem %s234, 108 [#allocation9]
        %1117 = vst [vmem:[%s1116] sm:$0xf] %v1115
        %s1118 = scalar_lea.vmem %s203, 112 [#allocation2]
        %v1119 = vld [vmem:[%s1118] sm:$0xf]
        %v1120 = vld [vmem:[%s1118 + $0x4] sm:$0xf]
        %v1121 = vsel %vm239, %v1119, 0.0
        %v1122 = vsel %vm239, %v1120, 0.0
        %v1123 = vadd.f32 %v1121, %v1122
        %1124 = vadd.xlane.f32.xlu0 %v1123
        %v1125 = vpop.xlane.xlu0 %1124
        %v1126 = vrot.slane %v1125, 4
        %v1127 = vadd.f32 %v1125, %v1126
        %v1128 = vrot.slane %v1127, 2
        %v1129 = vadd.f32 %v1127, %v1128
        %v1130 = vrot.slane %v1129, 1
        %v1131 = vadd.f32 %v1129, %v1130
        %s1132 = vtos %v1131
        %v1133 = vmul.f32 %v1119, %v1119
        %v1134 = vmul.f32 %v1120, %v1120
        %v1135 = vsel %vm239, %v1133, 0.0
        %v1136 = vsel %vm239, %v1134, 0.0
        %v1137 = vadd.f32 %v1135, %v1136
        %1138 = vadd.xlane.f32.xlu0 %v1137
        %v1139 = vpop.xlane.xlu0 %1138
        %v1140 = vrot.slane %v1139, 4
        %v1141 = vadd.f32 %v1139, %v1140
        %v1142 = vrot.slane %v1141, 2
        %v1143 = vadd.f32 %v1141, %v1142
        %v1144 = vrot.slane %v1143, 1
        %v1145 = vadd.f32 %v1143, %v1144
        %s1146 = vtos %v1145
        %s1147 = smul.f32 %s1132, 0.0009765625
        %s1148 = smul.f32 %s1132, %s1147
        %s1149 = ssub.f32 %s1146, %s1148
        %s1150 = smax.f32 %s1149, 0.0
        %s1151 = smul.f32 %s1150, 0.0009775171
        %s1152 = sadd.f32 %s1151, 1e-05
        %v1153 = vstv %s1152
        %v1154 = vrsqrt.pop %v1153
        %s1155 = vtos %v1154
        %s1156 = sadd.s32 %s336, 14
        %s1157 = smul.u32 %s1156, 2
        %s1158 = sld [smem:[#allocation6 + %s1157]]
        %s1159 = smul.f32 %s1155, %s1158
        %s1160 = sld [smem:[#allocation7 + %s1157]]
        %s1161 = smul.f32 %s1147, %s1159
        %s1162 = ssub.f32 %s1160, %s1161
        %v1163 = vstv %s1159
        %v1164 = vmul.f32 %v1119, %v1163
        %v1165 = vstv %s1162
        %v1166 = vadd.f32 %v1164, %v1165
        %s1167 = scalar_lea.vmem %s234, 112 [#allocation9]
        %1168 = vst [vmem:[%s1167] sm:$0xf] %v1166
        %s1169 = sadd.s32 %s1157, 1
        %s1170 = sld [smem:[#allocation6 + %s1169]]
        %s1171 = smul.f32 %s1155, %s1170
        %s1172 = sld [smem:[#allocation7 + %s1169]]
        %s1173 = smul.f32 %s1147, %s1171
        %s1174 = ssub.f32 %s1172, %s1173
        %v1175 = vstv %s1171
        %v1176 = vmul.f32 %v1120, %v1175
        %v1177 = vstv %s1174
        %v1178 = vadd.f32 %v1176, %v1177
        %s1179 = scalar_lea.vmem %s234, 116 [#allocation9]
        %1180 = vst [vmem:[%s1179] sm:$0xf] %v1178
        %s1181 = scalar_lea.vmem %s203, 120 [#allocation2]
        %v1182 = vld [vmem:[%s1181] sm:$0xf]
        %v1183 = vld [vmem:[%s1181 + $0x4] sm:$0xf]
        %v1184 = vsel %vm239, %v1182, 0.0
        %v1185 = vsel %vm239, %v1183, 0.0
        %v1186 = vadd.f32 %v1184, %v1185
        %1187 = vadd.xlane.f32.xlu0 %v1186
        %v1188 = vpop.xlane.xlu0 %1187
        %v1189 = vrot.slane %v1188, 4
        %v1190 = vadd.f32 %v1188, %v1189
        %v1191 = vrot.slane %v1190, 2
        %v1192 = vadd.f32 %v1190, %v1191
        %v1193 = vrot.slane %v1192, 1
        %v1194 = vadd.f32 %v1192, %v1193
        %s1195 = vtos %v1194
        %v1196 = vmul.f32 %v1182, %v1182
        %v1197 = vmul.f32 %v1183, %v1183
        %v1198 = vsel %vm239, %v1196, 0.0
        %v1199 = vsel %vm239, %v1197, 0.0
        %v1200 = vadd.f32 %v1198, %v1199
        %1201 = vadd.xlane.f32.xlu0 %v1200
        %v1202 = vpop.xlane.xlu0 %1201
        %v1203 = vrot.slane %v1202, 4
        %v1204 = vadd.f32 %v1202, %v1203
        %v1205 = vrot.slane %v1204, 2
        %v1206 = vadd.f32 %v1204, %v1205
        %v1207 = vrot.slane %v1206, 1
        %v1208 = vadd.f32 %v1206, %v1207
        %s1209 = vtos %v1208
        %s1210 = smul.f32 %s1195, 0.0009765625
        %s1211 = smul.f32 %s1195, %s1210
        %s1212 = ssub.f32 %s1209, %s1211
        %s1213 = smax.f32 %s1212, 0.0
        %s1214 = smul.f32 %s1213, 0.0009775171
        %s1215 = sadd.f32 %s1214, 1e-05
        %v1216 = vstv %s1215
        %v1217 = vrsqrt.pop %v1216
        %s1218 = vtos %v1217
        %s1219 = sadd.s32 %s336, 15
        %s1220 = smul.u32 %s1219, 2
        %s1221 = sld [smem:[#allocation6 + %s1220]]
        %s1222 = smul.f32 %s1218, %s1221
        %s1223 = sld [smem:[#allocation7 + %s1220]]
        %s1224 = smul.f32 %s1210, %s1222
        %s1225 = ssub.f32 %s1223, %s1224
        %v1226 = vstv %s1222
        %v1227 = vmul.f32 %v1182, %v1226
        %v1228 = vstv %s1225
        %v1229 = vadd.f32 %v1227, %v1228
        %s1230 = scalar_lea.vmem %s234, 120 [#allocation9]
        %1231 = vst [vmem:[%s1230] sm:$0xf] %v1229
        %s1232 = sadd.s32 %s1220, 1
        %s1233 = sld [smem:[#allocation6 + %s1232]]
        %s1234 = smul.f32 %s1218, %s1233
        %s1235 = sld [smem:[#allocation7 + %s1232]]
        %s1236 = smul.f32 %s1210, %s1234
        %s1237 = ssub.f32 %s1235, %s1236
        %v1238 = vstv %s1234
        %v1239 = vmul.f32 %v1183, %v1238
        %v1240 = vstv %s1237
        %v1241 = vadd.f32 %v1239, %v1240
        %s1242 = scalar_lea.vmem %s234, 124 [#allocation9]
        %1243 = vst [vmem:[%s1242] sm:$0xf] %v1241
        %s1244 = sand.u32 %s114, 1
        %s1245 = scalar_lea.sflag [#allocation4], %s1244
        %s1246 = sand.u32 %s114, 1
        %s1247 = smul.addr %s1246, 128
        %s1248 = scalar_lea.vmem [#allocation9], %s1247
        // Predicated region
        $region45: #{tpu_custom_call.1} parent=31 // pred_check
          %p1249 = pneg %p124
        $region46: #{tpu_custom_call.1} parent=31 // pred_check_branch
          %1251 = sbr.rel (%p1249) target = $region48
        $region47: #{tpu_custom_call.1} parent=31 // pred_region
          %s1252 = smul.u32 16, %s27
          %s1254 = ssub.s32 2048, 2048
          %1255 = vsyncadd %s1245, %s1254
          %s1256 = smul.addr %s1252, 2
          %s1257 = smul.addr %s26, 32
          %s1258 = sadd.s32 %s1256, %s1257
          %s1259 = smul.addr %s1258, 64
          %s1260 = scalar_lea.hbm %s3, %s1259
          %s1261 = sshll.u32 %s1248, 4
          %s1262 = int_to_ptr.vmem [resolvable:$true] %s1261
          %1267 = dma.vmem_to_hbm [thread:$0]  %s1262, 2048, %s1260, %s1245, 64, 64, 4
        $region48: #{tpu_custom_call.1} parent=31 // pred_fallthru
          _
      $region32: #{tpu_custom_call.1} parent=5 // pred_fallthru
        _
      %p1268 = scmp.le.s32.totalorder 2, %s17
      // Predicated region
      $region49: #{tpu_custom_call.1} parent=5 // pred_check
        %p1269 = pneg %p1268
      $region50: #{tpu_custom_call.1} parent=5 // pred_check_branch
        %1271 = sbr.rel (%p1269) target = $region52
      $region51: #{tpu_custom_call.1} parent=5 // pred_region
        %s1272 = ssub.s32 %s17, 2
        // Predicated region
        $region53: #{tpu_custom_call.1} parent=51 // pred_check
          %p1273 = pneg %p130
        $region54: #{tpu_custom_call.1} parent=51 // pred_check_branch
          %1275 = sbr.rel (%p1273) target = $region56
        $region55: #{tpu_custom_call.1} parent=51 // pred_region
          %s1276 = sand.u32 %s115, 1
          %s1277 = scalar_lea.sflag [#allocation4], %s1276
          %s1278 = sand.u32 %s115, 1
          %s1279 = smul.addr %s1278, 128
          %s1280 = scalar_lea.vmem [#allocation9], %s1279
          %1281 = dma.done %s1277, 2048
        $region56: #{tpu_custom_call.1} parent=51 // pred_fallthru
          _
      $region52: #{tpu_custom_call.1} parent=5 // pred_fallthru
        _
    $region6: #{tpu_custom_call.1} parent=1 // loop_footer
      %s21 = sadd.s32 1, %s17
    $region7: #{tpu_custom_call.1} parent=1 // loop_footer_branch
      %16 = sbr.rel target = $region3
    $region8: #{tpu_custom_call.1} parent=1 // loop_exit
      _
    %1282 = vsyncpa [#allocation3], 1
    %s1283 = scalar_lea.sflag [#allocation3], 1
    %1284 = vsyncpa %s1283, 1
    %1285 = vsyncpa [#allocation4], 1
    %s1286 = scalar_lea.sflag [#allocation4], 1
    %1287 = vsyncpa %s1286, 1
    %1288 = vsyncpa [#allocation5], 1
    %s1289 = scalar_lea.sflag [#allocation5], 1
    %1290 = vsyncpa %s1289, 1
    %1291 = vsyncpa [#allocation8], 1

</llo_original>
